<compile_context>
chip_gen: v5e
topology: v5e:2x2
jax: 0.10.0
libtpu: 0.0.40
codegen_flags: <defaults>
</compile_context>

<pallas_src>
import functools

import jax
import jax.numpy as jnp
from jax.experimental import pallas as pl
from jax.experimental.pallas import tpu as pltpu


def _fp_kernel(xyz1_ref, xyz2_ref, pts1_ref, pts2_ref, w1_ref, w2_ref, b_ref,
               out_ref):
    # Per-(batch, N-tile) blocks:
    #   xyz1_ref: (1, 3,  TN)  f32   channel-first coords of query points
    #   xyz2_ref: (1, S,  3)   f32   points-major coords of source points
    #   pts1_ref: (1, D1, TN)  bf16  channel-first features of query points
    #   pts2_ref: (1, D2, S)   bf16  channel-first features of source points
    #   w1_ref:   (Cout, D1)   bf16  (= w_lin[:D1].T)
    #   w2_ref:   (Cout, D2)   bf16  (= w_lin[D1:].T)
    #   b_ref:    (Cout, 1)    f32
    #   out_ref:  (1, Cout, TN)      channel-first output tile (lane-dense)
    xyz1 = xyz1_ref[0]                      # [3, TN]
    xyz2 = xyz2_ref[0]                      # [S, 3]
    S = xyz2.shape[0]
    TN = xyz1.shape[1]

    # --- square_distance, transposed layout: d_T[s, n]  (S sublanes, N lanes)
    # Pure VPU: 3 broadcast subtract/multiply/add passes; exactly >= 0.
    d_T = jnp.zeros((S, TN), jnp.float32)
    for c in range(3):
        diff = xyz2[:, c:c + 1] - xyz1[c:c + 1, :]      # [S,1]-[1,TN] -> [S,TN]
        d_T = d_T + diff * diff

    # --- 3-NN selection + inverse-distance weights as a sparse [S, TN] matrix.
    # Iterative masked-min; first-index tie-break matches torch.sort selection.
    row = jax.lax.broadcasted_iota(jnp.int32, (S, TN), 0)
    big = jnp.float32(3.0e38)
    d_work = d_T
    w_mat = jnp.zeros((S, TN), jnp.float32)
    w_sum = jnp.zeros((1, TN), jnp.float32)
    for _ in range(3):
        d_min = jnp.min(d_work, axis=0, keepdims=True)                  # [1,TN]
        is_min = d_work == d_min                                        # [S,TN]
        idx_min = jnp.min(jnp.where(is_min, row, S), axis=0,
                          keepdims=True)                                # [1,TN]
        onehot = (row == idx_min).astype(jnp.float32)                   # [S,TN]
        w_k = pl.reciprocal(jnp.maximum(d_min, jnp.float32(1e-10)),
                            approx=False)                               # [1,TN]
        w_mat = w_mat + onehot * w_k
        w_sum = w_sum + w_k
        d_work = jnp.where(onehot > 0.0, big, d_work)
    w_mat = w_mat * pl.reciprocal(w_sum, approx=False)                  # [S,TN]

    # --- interpolation as an MXU matmul, channel-first: [D2,S] @ [S,TN].
    # Weights stay f32 (1/d values are not bf16-representable to 1e-4).
    pts2 = pts2_ref[0].astype(jnp.float32)                              # [D2,S]
    interp = jnp.dot(pts2, w_mat, preferred_element_type=jnp.float32)   # [D2,TN]

    # --- depointconv stand-in: pointwise linear, concat split into two dots
    #     accumulating into the same f32 [Cout, TN] tile (no lane-concat copy).
    out = jnp.dot(w1_ref[...], pts1_ref[0],
                  preferred_element_type=jnp.float32)                   # bf16 MXU
    out = out + jnp.dot(w2_ref[...].astype(jnp.float32), interp,
                        preferred_element_type=jnp.float32)
    out = out + b_ref[...]                                              # [Cout,TN]
    out_ref[0] = out.astype(out_ref.dtype)


def _pick_tile_n(n, max_tile=512):
    """Largest N-tile <= max_tile that divides n and is a multiple of 128
    (or the whole axis if n is small / awkward)."""
    if n <= max_tile:
        return n
    t = max_tile - (max_tile % 128)
    while t >= 128:
        if n % t == 0:
            return t
        t -= 128
    return n


def pointnet_fp_pointconv(xyz1, xyz2, points1, points2, w_lin, b_lin,
                          npoint=None, radius=None, nsample=None, tile_n=None):
    """Forward pass.

    xyz1:    [B, 3, N]   xyz2:    [B, 3, S]
    points1: [B, D1, N]  points2: [B, D2, S]
    w_lin:   [D1+D2, Cout]  b_lin: [1, Cout]
    returns: [B, Cout, N]   (channel-first, same as the PyTorch module)
    """
    del npoint, radius, nsample  # TODO(synk): unused without depointconv source
    B, _, N = xyz1.shape
    S = xyz2.shape[2]
    D1 = points1.shape[1]
    D2 = points2.shape[1]
    Cin, Cout = w_lin.shape
    assert Cin == D1 + D2
    assert S >= 3, "S==1/S<3 branch not implemented"

    TN = tile_n if tile_n is not None else _pick_tile_n(N)
    assert N % TN == 0, (N, TN)

    # Only xyz2 (tiny) is transposed; the big tensors stay channel-first.
    xyz1_cf = xyz1.astype(jnp.float32)                              # [B, 3, N]
    xyz2_pm = jnp.transpose(xyz2, (0, 2, 1)).astype(jnp.float32)    # [B, S, 3]
    p1_cf = points1.astype(jnp.bfloat16)                            # [B, D1, N]
    p2_cf = points2.astype(jnp.bfloat16)                            # [B, D2, S]
    w1_t = jnp.transpose(w_lin[:D1]).astype(jnp.bfloat16)           # [Cout, D1]
    w2_t = jnp.transpose(w_lin[D1:]).astype(jnp.bfloat16)           # [Cout, D2]
    b_col = jnp.reshape(b_lin.astype(jnp.float32), (Cout, 1))       # [Cout, 1]

    out = pl.pallas_call(
        _fp_kernel,
        out_shape=jax.ShapeDtypeStruct((B, Cout, N), jnp.float32),
        grid_spec=pltpu.PrefetchScalarGridSpec(
            num_scalar_prefetch=0,
            grid=(B, N // TN),
            in_specs=[
                pl.BlockSpec((1, 3, TN), lambda b, n: (b, 0, n)),
                pl.BlockSpec((1, S, 3), lambda b, n: (b, 0, 0)),
                pl.BlockSpec((1, D1, TN), lambda b, n: (b, 0, n)),
                pl.BlockSpec((1, D2, S), lambda b, n: (b, 0, 0)),
                pl.BlockSpec((Cout, D1), lambda b, n: (0, 0)),
                pl.BlockSpec((Cout, D2), lambda b, n: (0, 0)),
                pl.BlockSpec((Cout, 1), lambda b, n: (0, 0)),
            ],
            out_specs=pl.BlockSpec((1, Cout, TN), lambda b, n: (b, 0, n)),
        ),
        compiler_params=pltpu.CompilerParams(
            dimension_semantics=("parallel", "parallel"),
            vmem_limit_bytes=32 * 1024 * 1024),
    )(xyz1_cf, xyz2_pm, p1_cf, p2_cf, w1_t, w2_t, b_col)

    return out                                                      # [B, Cout, N]


def _reference(xyz1, xyz2, points1, points2, w_lin, b_lin):
    """Pure-JAX f32 reference mirroring the PyTorch forward (S > 1 branch)."""
    x1 = jnp.transpose(xyz1, (0, 2, 1))
    x2 = jnp.transpose(xyz2, (0, 2, 1))
    p1 = jnp.transpose(points1, (0, 2, 1))
    p2 = jnp.transpose(points2, (0, 2, 1))
    d = (jnp.sum(x1 ** 2, -1)[:, :, None] + jnp.sum(x2 ** 2, -1)[:, None, :]
         - 2.0 * jnp.einsum("bnc,bsc->bns", x1, x2))
    idx = jnp.argsort(d, axis=-1)[:, :, :3]
    dsel = jnp.take_along_axis(d, idx, axis=-1)
    dsel = jnp.maximum(dsel, 1e-10)
    w = 1.0 / dsel
    w = w / jnp.sum(w, axis=-1, keepdims=True)
    gathered = jax.vmap(lambda pts, ind: pts[ind])(p2, idx)         # [B,N,3,D2]
    interp = jnp.sum(gathered * w[..., None], axis=2)               # [B,N,D2]
    feat = jnp.concatenate([p1, interp], axis=-1)                   # [B,N,Cin]
    out = jnp.einsum("bnc,co->bno", feat, w_lin) + b_lin
    return jnp.transpose(out, (0, 2, 1))


if __name__ == "__main__":
    key = jax.random.PRNGKey(0)
    B, N, S = 2, 256, 64
    D1, D2 = 16, 32
    in_channel = D1 + D2          # module's in_channel
    mlp = [64]                    # mlp[-1] = output channels of depointconv
    npoint, radius, nsample = 16, 0.4, 8

    k1, k2, k3, k4, k5, k6 = jax.random.split(key, 6)
    xyz1 = jax.random.normal(k1, (B, 3, N), jnp.float32)
    xyz2 = jax.random.normal(k2, (B, 3, S), jnp.float32)
    # Feature / weight tensors are pre-rounded to bf16-representable values so
    # the bf16-operand MXU path in the kernel is exact vs. the f32 reference.
    points1 = jax.random.normal(k3, (B, D1, N), jnp.float32).astype(
        jnp.bfloat16).astype(jnp.float32)
    points2 = jax.random.normal(k4, (B, D2, S), jnp.float32).astype(
        jnp.bfloat16).astype(jnp.float32)
    w_lin = (jax.random.normal(k5, (in_channel, mlp[-1]), jnp.float32)
             * 0.05).astype(jnp.bfloat16).astype(jnp.float32)
    b_lin = jax.random.normal(k6, (1, mlp[-1]), jnp.float32) * 0.01

    fwd = jax.jit(functools.partial(
        pointnet_fp_pointconv, npoint=npoint, radius=radius, nsample=nsample,
        tile_n=128))   # tile_n=128 -> grid=(B, 2) to exercise the N tiling
    out = fwd(xyz1, xyz2, points1, points2, w_lin, b_lin)
    out = jax.block_until_ready(out)

    ref = _reference(xyz1, xyz2, points1, points2, w_lin, b_lin)
    assert out.shape == (B, mlp[-1], N), out.shape
    assert jnp.allclose(out, ref, rtol=1e-3, atol=1e-3), (
        float(jnp.max(jnp.abs(out - ref))))
    print("KERNEL_OK")
</pallas_src>

<mosaic_0001>
module attributes {stable_mosaic.version = 11 : i64} {
  func.func @_fp_kernel(%arg0: i32, %arg1: i32, %arg2: memref<1x3x128xf32, #tpu.memory_space<vmem>>, %arg3: memref<1x64x3xf32, #tpu.memory_space<vmem>>, %arg4: memref<1x16x128xbf16, #tpu.memory_space<vmem>>, %arg5: memref<1x32x64xbf16, #tpu.memory_space<vmem>>, %arg6: memref<64x16xbf16, #tpu.memory_space<vmem>>, %arg7: memref<64x32xbf16, #tpu.memory_space<vmem>>, %arg8: memref<64x1xf32, #tpu.memory_space<vmem>>, %arg9: memref<1x64x128xf32, #tpu.memory_space<vmem>>) attributes {dimension_semantics = [#tpu.dimension_semantics<parallel>, #tpu.dimension_semantics<parallel>], iteration_bounds = array<i64: 2, 2>, scalar_prefetch = 0 : i64, scratch_operands = 0 : i64, tpu.core_type = #tpu.core_type<tc>, window_params = [{transform_indices = @transform_0, window_bounds = array<i64: 1, 3, 128>}, {transform_indices = @transform_1, window_bounds = array<i64: 1, 64, 3>}, {transform_indices = @transform_2, window_bounds = array<i64: 1, 16, 128>}, {transform_indices = @transform_3, window_bounds = array<i64: 1, 32, 64>}, {pipeline_mode = #tpu.pipeline_mode<synchronous>, transform_indices = @transform_4, window_bounds = array<i64: 64, 16>}, {pipeline_mode = #tpu.pipeline_mode<synchronous>, transform_indices = @transform_5, window_bounds = array<i64: 64, 32>}, {pipeline_mode = #tpu.pipeline_mode<synchronous>, transform_indices = @transform_6, window_bounds = array<i64: 64, 1>}, {transform_indices = @transform_7, window_bounds = array<i64: 1, 64, 128>}]} {
    %c0 = arith.constant 0 : index
    %c0_0 = arith.constant 0 : index
    %c0_1 = arith.constant 0 : index
    %0 = vector.load %arg2[%c0, %c0_0, %c0_1] : memref<1x3x128xf32, #tpu.memory_space<vmem>>, vector<1x3x128xf32>
    %1 = vector.shape_cast %0 : vector<1x3x128xf32> to vector<3x128xf32>
    %c0_2 = arith.constant 0 : index
    %c0_3 = arith.constant 0 : index
    %c0_4 = arith.constant 0 : index
    %2 = vector.load %arg3[%c0_2, %c0_3, %c0_4] : memref<1x64x3xf32, #tpu.memory_space<vmem>>, vector<1x64x3xf32>
    %3 = vector.shape_cast %2 : vector<1x64x3xf32> to vector<64x3xf32>
    %cst = arith.constant 0.000000e+00 : f32
    %4 = vector.broadcast %cst : f32 to vector<64x128xf32>
    %5 = vector.extract_strided_slice %3 {offsets = [0, 0], sizes = [64, 1], strides = [1, 1]} : vector<64x3xf32> to vector<64x1xf32>
    %6 = vector.extract_strided_slice %1 {offsets = [0, 0], sizes = [1, 128], strides = [1, 1]} : vector<3x128xf32> to vector<1x128xf32>
    %7 = vector.broadcast %5 : vector<64x1xf32> to vector<64x128xf32>
    %8 = vector.broadcast %6 : vector<1x128xf32> to vector<64x128xf32>
    %9 = arith.subf %7, %8 : vector<64x128xf32>
    %10 = arith.mulf %9, %9 : vector<64x128xf32>
    %11 = arith.addf %4, %10 : vector<64x128xf32>
    %12 = vector.extract_strided_slice %3 {offsets = [0, 1], sizes = [64, 1], strides = [1, 1]} : vector<64x3xf32> to vector<64x1xf32>
    %13 = vector.extract_strided_slice %1 {offsets = [1, 0], sizes = [1, 128], strides = [1, 1]} : vector<3x128xf32> to vector<1x128xf32>
    %14 = vector.broadcast %12 : vector<64x1xf32> to vector<64x128xf32>
    %15 = vector.broadcast %13 : vector<1x128xf32> to vector<64x128xf32>
    %16 = arith.subf %14, %15 : vector<64x128xf32>
    %17 = arith.mulf %16, %16 : vector<64x128xf32>
    %18 = arith.addf %11, %17 : vector<64x128xf32>
    %19 = vector.extract_strided_slice %3 {offsets = [0, 2], sizes = [64, 1], strides = [1, 1]} : vector<64x3xf32> to vector<64x1xf32>
    %20 = vector.extract_strided_slice %1 {offsets = [2, 0], sizes = [1, 128], strides = [1, 1]} : vector<3x128xf32> to vector<1x128xf32>
    %21 = vector.broadcast %19 : vector<64x1xf32> to vector<64x128xf32>
    %22 = vector.broadcast %20 : vector<1x128xf32> to vector<64x128xf32>
    %23 = arith.subf %21, %22 : vector<64x128xf32>
    %24 = arith.mulf %23, %23 : vector<64x128xf32>
    %25 = arith.addf %18, %24 : vector<64x128xf32>
    %26 = tpu.iota {dimensions = array<i32: 0>} : vector<64x128xi32>
    %cst_5 = arith.constant 0.000000e+00 : f32
    %27 = vector.broadcast %cst_5 : f32 to vector<64x128xf32>
    %cst_6 = arith.constant 0.000000e+00 : f32
    %28 = vector.broadcast %cst_6 : f32 to vector<1x128xf32>
    %cst_7 = arith.constant dense<0x7F800000> : vector<128xf32>
    %29 = vector.multi_reduction <minimumf>, %25, %cst_7 [0] : vector<64x128xf32> to vector<128xf32>
    %30 = vector.shape_cast %29 : vector<128xf32> to vector<1x128xf32>
    %31 = vector.broadcast %30 : vector<1x128xf32> to vector<64x128xf32>
    %32 = arith.cmpf oeq, %25, %31 : vector<64x128xf32>
    %c64_i32 = arith.constant 64 : i32
    %33 = vector.broadcast %c64_i32 : i32 to vector<64x128xi32>
    %34 = arith.select %32, %26, %33 : vector<64x128xi1>, vector<64x128xi32>
    %cst_8 = arith.constant dense<2147483647> : vector<128xi32>
    %35 = vector.multi_reduction <minsi>, %34, %cst_8 [0] : vector<64x128xi32> to vector<128xi32>
    %36 = vector.shape_cast %35 : vector<128xi32> to vector<1x128xi32>
    %37 = vector.broadcast %36 : vector<1x128xi32> to vector<64x128xi32>
    %38 = arith.cmpi eq, %26, %37 : vector<64x128xi32>
    %39 = arith.extui %38 : vector<64x128xi1> to vector<64x128xi32>
    %40 = arith.sitofp %39 : vector<64x128xi32> to vector<64x128xf32>
    %cst_9 = arith.constant 1.000000e-10 : f32
    %41 = vector.broadcast %cst_9 : f32 to vector<1x128xf32>
    %42 = arith.maximumf %30, %41 : vector<1x128xf32>
    %43 = tpu.reciprocal %42 : vector<1x128xf32> -> vector<1x128xf32>
    %44 = vector.broadcast %43 : vector<1x128xf32> to vector<64x128xf32>
    %45 = arith.mulf %40, %44 : vector<64x128xf32>
    %46 = arith.addf %27, %45 : vector<64x128xf32>
    %47 = arith.addf %28, %43 : vector<1x128xf32>
    %cst_10 = arith.constant 0.000000e+00 : f32
    %48 = vector.broadcast %cst_10 : f32 to vector<64x128xf32>
    %49 = arith.cmpf ogt, %40, %48 : vector<64x128xf32>
    %cst_11 = arith.constant 3.000000e+38 : f32
    %50 = vector.broadcast %cst_11 : f32 to vector<64x128xf32>
    %51 = arith.select %49, %50, %25 : vector<64x128xi1>, vector<64x128xf32>
    %cst_12 = arith.constant dense<0x7F800000> : vector<128xf32>
    %52 = vector.multi_reduction <minimumf>, %51, %cst_12 [0] : vector<64x128xf32> to vector<128xf32>
    %53 = vector.shape_cast %52 : vector<128xf32> to vector<1x128xf32>
    %54 = vector.broadcast %53 : vector<1x128xf32> to vector<64x128xf32>
    %55 = arith.cmpf oeq, %51, %54 : vector<64x128xf32>
    %c64_i32_13 = arith.constant 64 : i32
    %56 = vector.broadcast %c64_i32_13 : i32 to vector<64x128xi32>
    %57 = arith.select %55, %26, %56 : vector<64x128xi1>, vector<64x128xi32>
    %cst_14 = arith.constant dense<2147483647> : vector<128xi32>
    %58 = vector.multi_reduction <minsi>, %57, %cst_14 [0] : vector<64x128xi32> to vector<128xi32>
    %59 = vector.shape_cast %58 : vector<128xi32> to vector<1x128xi32>
    %60 = vector.broadcast %59 : vector<1x128xi32> to vector<64x128xi32>
    %61 = arith.cmpi eq, %26, %60 : vector<64x128xi32>
    %62 = arith.extui %61 : vector<64x128xi1> to vector<64x128xi32>
    %63 = arith.sitofp %62 : vector<64x128xi32> to vector<64x128xf32>
    %cst_15 = arith.constant 1.000000e-10 : f32
    %64 = vector.broadcast %cst_15 : f32 to vector<1x128xf32>
    %65 = arith.maximumf %53, %64 : vector<1x128xf32>
    %66 = tpu.reciprocal %65 : vector<1x128xf32> -> vector<1x128xf32>
    %67 = vector.broadcast %66 : vector<1x128xf32> to vector<64x128xf32>
    %68 = arith.mulf %63, %67 : vector<64x128xf32>
    %69 = arith.addf %46, %68 : vector<64x128xf32>
    %70 = arith.addf %47, %66 : vector<1x128xf32>
    %cst_16 = arith.constant 0.000000e+00 : f32
    %71 = vector.broadcast %cst_16 : f32 to vector<64x128xf32>
    %72 = arith.cmpf ogt, %63, %71 : vector<64x128xf32>
    %cst_17 = arith.constant 3.000000e+38 : f32
    %73 = vector.broadcast %cst_17 : f32 to vector<64x128xf32>
    %74 = arith.select %72, %73, %51 : vector<64x128xi1>, vector<64x128xf32>
    %cst_18 = arith.constant dense<0x7F800000> : vector<128xf32>
    %75 = vector.multi_reduction <minimumf>, %74, %cst_18 [0] : vector<64x128xf32> to vector<128xf32>
    %76 = vector.shape_cast %75 : vector<128xf32> to vector<1x128xf32>
    %77 = vector.broadcast %76 : vector<1x128xf32> to vector<64x128xf32>
    %78 = arith.cmpf oeq, %74, %77 : vector<64x128xf32>
    %c64_i32_19 = arith.constant 64 : i32
    %79 = vector.broadcast %c64_i32_19 : i32 to vector<64x128xi32>
    %80 = arith.select %78, %26, %79 : vector<64x128xi1>, vector<64x128xi32>
    %cst_20 = arith.constant dense<2147483647> : vector<128xi32>
    %81 = vector.multi_reduction <minsi>, %80, %cst_20 [0] : vector<64x128xi32> to vector<128xi32>
    %82 = vector.shape_cast %81 : vector<128xi32> to vector<1x128xi32>
    %83 = vector.broadcast %82 : vector<1x128xi32> to vector<64x128xi32>
    %84 = arith.cmpi eq, %26, %83 : vector<64x128xi32>
    %85 = arith.extui %84 : vector<64x128xi1> to vector<64x128xi32>
    %86 = arith.sitofp %85 : vector<64x128xi32> to vector<64x128xf32>
    %cst_21 = arith.constant 1.000000e-10 : f32
    %87 = vector.broadcast %cst_21 : f32 to vector<1x128xf32>
    %88 = arith.maximumf %76, %87 : vector<1x128xf32>
    %89 = tpu.reciprocal %88 : vector<1x128xf32> -> vector<1x128xf32>
    %90 = vector.broadcast %89 : vector<1x128xf32> to vector<64x128xf32>
    %91 = arith.mulf %86, %90 : vector<64x128xf32>
    %92 = arith.addf %69, %91 : vector<64x128xf32>
    %93 = arith.addf %70, %89 : vector<1x128xf32>
    %94 = tpu.reciprocal %93 : vector<1x128xf32> -> vector<1x128xf32>
    %95 = vector.broadcast %94 : vector<1x128xf32> to vector<64x128xf32>
    %96 = arith.mulf %92, %95 : vector<64x128xf32>
    %c0_22 = arith.constant 0 : index
    %c0_23 = arith.constant 0 : index
    %c0_24 = arith.constant 0 : index
    %97 = vector.load %arg5[%c0_22, %c0_23, %c0_24] : memref<1x32x64xbf16, #tpu.memory_space<vmem>>, vector<1x32x64xbf16>
    %98 = vector.shape_cast %97 : vector<1x32x64xbf16> to vector<32x64xbf16>
    %99 = arith.extf %98 : vector<32x64xbf16> to vector<32x64xf32>
    %cst_25 = arith.constant dense<0.000000e+00> : vector<32x128xf32>
    %100 = tpu.matmul %99, %96, %cst_25 {dimension_numbers = #tpu.dot_dimension_numbers<[1], [0], [0], [1], [0, 0, 1, 1], [], []>} : vector<32x64xf32>, vector<64x128xf32>, vector<32x128xf32> -> vector<32x128xf32>
    %c0_26 = arith.constant 0 : index
    %c0_27 = arith.constant 0 : index
    %101 = vector.load %arg6[%c0_26, %c0_27] : memref<64x16xbf16, #tpu.memory_space<vmem>>, vector<64x16xbf16>
    %c0_28 = arith.constant 0 : index
    %c0_29 = arith.constant 0 : index
    %c0_30 = arith.constant 0 : index
    %102 = vector.load %arg4[%c0_28, %c0_29, %c0_30] : memref<1x16x128xbf16, #tpu.memory_space<vmem>>, vector<1x16x128xbf16>
    %103 = vector.shape_cast %102 : vector<1x16x128xbf16> to vector<16x128xbf16>
    %cst_31 = arith.constant dense<0.000000e+00> : vector<64x128xf32>
    %104 = tpu.matmul %101, %103, %cst_31 {dimension_numbers = #tpu.dot_dimension_numbers<[1], [0], [0], [1], [0, 0, 1, 1], [], []>} : vector<64x16xbf16>, vector<16x128xbf16>, vector<64x128xf32> -> vector<64x128xf32>
    %c0_32 = arith.constant 0 : index
    %c0_33 = arith.constant 0 : index
    %105 = vector.load %arg7[%c0_32, %c0_33] : memref<64x32xbf16, #tpu.memory_space<vmem>>, vector<64x32xbf16>
    %106 = arith.extf %105 : vector<64x32xbf16> to vector<64x32xf32>
    %cst_34 = arith.constant dense<0.000000e+00> : vector<64x128xf32>
    %107 = tpu.matmul %106, %100, %cst_34 {dimension_numbers = #tpu.dot_dimension_numbers<[1], [0], [0], [1], [0, 0, 1, 1], [], []>} : vector<64x32xf32>, vector<32x128xf32>, vector<64x128xf32> -> vector<64x128xf32>
    %108 = arith.addf %104, %107 : vector<64x128xf32>
    %c0_35 = arith.constant 0 : index
    %c0_36 = arith.constant 0 : index
    %109 = vector.load %arg8[%c0_35, %c0_36] : memref<64x1xf32, #tpu.memory_space<vmem>>, vector<64x1xf32>
    %110 = vector.broadcast %109 : vector<64x1xf32> to vector<64x128xf32>
    %111 = arith.addf %108, %110 : vector<64x128xf32>
    %c0_37 = arith.constant 0 : index
    %c0_38 = arith.constant 0 : index
    %c0_39 = arith.constant 0 : index
    %112 = vector.load %arg9[%c0_37, %c0_38, %c0_39] : memref<1x64x128xf32, #tpu.memory_space<vmem>>, vector<1x64x128xf32>
    %113 = vector.shape_cast %112 : vector<1x64x128xf32> to vector<64x128xf32>
    %114 = vector.shape_cast %111 : vector<64x128xf32> to vector<1x64x128xf32>
    tpu.vector_store %arg9[%c0_37, %c0_38, %c0_39], %114 {strides = array<i32>} : memref<1x64x128xf32, #tpu.memory_space<vmem>>, vector<1x64x128xf32>,
    return
  }
  func.func @transform_0(%arg0: i32, %arg1: i32) -> (i32, i32, i32) {
    %c0_i32 = arith.constant 0 : i32
    %c0_i32_0 = arith.constant 0 : i32
    return %arg0, %c0_i32, %arg1 : i32, i32, i32
  }
  func.func @transform_1(%arg0: i32, %arg1: i32) -> (i32, i32, i32) {
    %c0_i32 = arith.constant 0 : i32
    %c0_i32_0 = arith.constant 0 : i32
    %c0_i32_1 = arith.constant 0 : i32
    return %arg0, %c0_i32, %c0_i32_0 : i32, i32, i32
  }
  func.func @transform_2(%arg0: i32, %arg1: i32) -> (i32, i32, i32) {
    %c0_i32 = arith.constant 0 : i32
    %c0_i32_0 = arith.constant 0 : i32
    return %arg0, %c0_i32, %arg1 : i32, i32, i32
  }
  func.func @transform_3(%arg0: i32, %arg1: i32) -> (i32, i32, i32) {
    %c0_i32 = arith.constant 0 : i32
    %c0_i32_0 = arith.constant 0 : i32
    %c0_i32_1 = arith.constant 0 : i32
    return %arg0, %c0_i32, %c0_i32_0 : i32, i32, i32
  }
  func.func @transform_4(%arg0: i32, %arg1: i32) -> (i32, i32) {
    %c0_i32 = arith.constant 0 : i32
    %c0_i32_0 = arith.constant 0 : i32
    %c0_i32_1 = arith.constant 0 : i32
    return %c0_i32, %c0_i32_0 : i32, i32
  }
  func.func @transform_5(%arg0: i32, %arg1: i32) -> (i32, i32) {
    %c0_i32 = arith.constant 0 : i32
    %c0_i32_0 = arith.constant 0 : i32
    %c0_i32_1 = arith.constant 0 : i32
    return %c0_i32, %c0_i32_0 : i32, i32
  }
  func.func @transform_6(%arg0: i32, %arg1: i32) -> (i32, i32) {
    %c0_i32 = arith.constant 0 : i32
    %c0_i32_0 = arith.constant 0 : i32
    %c0_i32_1 = arith.constant 0 : i32
    return %c0_i32, %c0_i32_0 : i32, i32
  }
  func.func @transform_7(%arg0: i32, %arg1: i32) -> (i32, i32, i32) {
    %c0_i32 = arith.constant 0 : i32
    %c0_i32_0 = arith.constant 0 : i32
    return %arg0, %c0_i32, %arg1 : i32, i32, i32
  }
}

</mosaic_0001>

<llo_original>
// kernel: pointnet_fp_pointconv.1
$region0: #{pointnet_fp_pointconv.1}
  #allocation0 [shape = 'u32[]', space=smem, size = 0x4, offset = 0x4, fixed_abs, tag = 'smem constant byte address 0x4 - core index']
  #allocation1 [shape = 'u32[72,128]{1,0:T(1,128)}', space=vmem, size = 0x9000, scoped, tag = 'internal scratch']
  %s0 = inlined_call_operand.vmem [shape: f32[2,3,256], index: 0, kind: input, shape index: {}]
  %s1 = inlined_call_operand.vmem [shape: f32[2,64,3], index: 1, kind: input, shape index: {}]
  %s2 = inlined_call_operand.vmem [shape: bf16[2,16,256], index: 2, kind: input, shape index: {}]
  %s3 = inlined_call_operand.vmem [shape: bf16[2,32,64], index: 3, kind: input, shape index: {}]
  %s4 = inlined_call_operand.vmem [shape: bf16[64,16], index: 4, kind: input, shape index: {}]
  %s5 = inlined_call_operand.vmem [shape: bf16[64,32], index: 5, kind: input, shape index: {}]
  %s6 = inlined_call_operand.vmem [shape: f32[64,1], index: 6, kind: input, shape index: {}]
  %s7 = inlined_call_operand.hbm [shape: f32[2,64,256], index: 7, kind: output, shape index: {}]
  %s8 = sld [smem:[#allocation0]]
  $region102: #{pointnet_fp_pointconv.1} parent=0
    _
  %s10 = ssub.s32 1, %s8
  %s11 = scalar_select 0, %s10, %s8
  $region1: #{pointnet_fp_pointconv.1} parent=0
    #allocation2 [shape = 'u8[8192]{0}', space=vmem, size = 0x2000, scoped, tag = 'input window, operand 2']
    #allocation3 [shape = 'u8[65536]{0}', space=vmem, size = 0x10000, scoped, tag = 'output window, operand 0']
    #allocation4 [shape = 's32[2]{0}', space=sflag, size = 0x8, scoped, tag = 'scoped memory for pointnet_fp_pointconv.1']
    %12 = vsyncpa [#allocation4], 0
    %s13 = scalar_lea.sflag [#allocation4], 1
    %14 = vsyncpa %s13, 0
    loop: start=0, step=1, limit=6
    $region2: #{pointnet_fp_pointconv.1} parent=1 // loop_pre_header
      _
    $region3: #{pointnet_fp_pointconv.1} parent=1 // loop_header
      %s16 = sphi 0, %s20
      %p17 = scmp.ge.s32.totalorder %s16, 6
      %s23 = sphi 0, %s35
      %s24 = sphi 0, %s31
      %s25 = sphi 0, %s23
      %s26 = sphi 0, %s24
      %s27 = sphi 0, %s25
      %s28 = sphi 0, %s26
      %s40 = sphi 0, %s42
      %s43 = sphi 0, %s40
      %s44 = sphi 0, %s43
      %s60 = sphi 0, %s44
      %s66 = sphi 0, %s68
      %s69 = sphi 0, %s66
      %s70 = sphi 0, %s69
      %s86 = sphi 0, %s70
      %s94 = sphi 0, %s96
      %s97 = sphi 0, %s94
      %s98 = sphi 0, %s97
      %s114 = sphi 0, %s98
      %s120 = sphi 0, %s122
      %s123 = sphi 0, %s120
      %s124 = sphi 0, %s123
      %s140 = sphi 0, %s124
      %s144 = sphi 0, %s144
      %s146 = sphi 0, %s144
      %s147 = sphi 0, %s146
      %s161 = sphi 0, %s147
      %s165 = sphi 0, %s165
      %s167 = sphi 0, %s165
      %s168 = sphi 0, %s167
      %s182 = sphi 0, %s168
      %s186 = sphi 0, %s186
      %s188 = sphi 0, %s186
      %s189 = sphi 0, %s188
      %s203 = sphi 0, %s189
      %s211 = sphi 0, %s213
      %s214 = sphi 0, %s211
      %s215 = sphi 0, %s214
      %s231 = sphi 0, %s215
    $region4: #{pointnet_fp_pointconv.1} parent=1 // loop_header_branch
      %19 = sbr.rel (%p17) target = $region8
    $region5: #{pointnet_fp_pointconv.1} parent=1 // loop_body
      %s21 = ssub.s32 %s16, 1
      %s22 = ssub.s32 %s16, 2
      %s29 = sadd.s32 1, %s24
      %p30 = scmp.ge.s32.totalorder %s29, 2
      %s31 = scalar_select %p30, 0, %s29
      %s32 = sadd.s32 1, %s23
      %s33 = scalar_select %p30, %s32, %s23
      %p34 = scmp.ge.s32.totalorder %s33, 2
      %s35 = scalar_select %p34, 0, %s33
      %s36 = ssub.s32 %s23, %s35
      %s37 = ssub.s32 %s24, %s31
      %s38 = sor.u32 %s36, %s37
      %p39 = scmp.eq.s32.totalorder %s38, 0
      %s41 = sadd.s32 %s40, 1
      %s42 = scalar_select %p39, %s40, %s41
      %p45 = pneg %p39
      %p46 = scmp.eq.s32.totalorder %s16, 3
      %p47 = por %p45, %p46
      %p48 = scmp.ne.s32.totalorder %s40, %s43
      %p49 = scmp.eq.s32.totalorder %s16, 0
      %p50 = por %p48, %p49
      %p51 = scmp.ne.s32.totalorder %s40, %s43
      %p52 = scmp.eq.s32.totalorder %s21, 3
      %p53 = por %p51, %p52
      %p54 = scmp.ne.s32.totalorder %s43, %s44
      %p55 = scmp.eq.s32.totalorder %s21, 0
      %p56 = por %p54, %p55
      %p57 = scmp.ne.s32.totalorder %s43, %s44
      %p58 = scmp.eq.s32.totalorder %s22, 3
      %p59 = por %p57, %p58
      %p61 = scmp.ne.s32.totalorder %s44, %s60
      %p62 = scmp.eq.s32.totalorder %s22, 0
      %p63 = por %p61, %p62
      %s64 = ssub.s32 %s23, %s35
      %p65 = scmp.eq.s32.totalorder %s64, 0
      %s67 = sadd.s32 %s66, 1
      %s68 = scalar_select %p65, %s66, %s67
      %p71 = pneg %p65
      %p72 = scmp.eq.s32.totalorder %s16, 3
      %p73 = por %p71, %p72
      %p74 = scmp.ne.s32.totalorder %s66, %s69
      %p75 = scmp.eq.s32.totalorder %s16, 0
      %p76 = por %p74, %p75
      %p77 = scmp.ne.s32.totalorder %s66, %s69
      %p78 = scmp.eq.s32.totalorder %s21, 3
      %p79 = por %p77, %p78
      %p80 = scmp.ne.s32.totalorder %s69, %s70
      %p81 = scmp.eq.s32.totalorder %s21, 0
      %p82 = por %p80, %p81
      %p83 = scmp.ne.s32.totalorder %s69, %s70
      %p84 = scmp.eq.s32.totalorder %s22, 3
      %p85 = por %p83, %p84
      %p87 = scmp.ne.s32.totalorder %s70, %s86
      %p88 = scmp.eq.s32.totalorder %s22, 0
      %p89 = por %p87, %p88
      %s90 = ssub.s32 %s23, %s35
      %s91 = ssub.s32 %s24, %s31
      %s92 = sor.u32 %s90, %s91
      %p93 = scmp.eq.s32.totalorder %s92, 0
      %s95 = sadd.s32 %s94, 1
      %s96 = scalar_select %p93, %s94, %s95
      %p99 = pneg %p93
      %p100 = scmp.eq.s32.totalorder %s16, 3
      %p101 = por %p99, %p100
      %p102 = scmp.ne.s32.totalorder %s94, %s97
      %p103 = scmp.eq.s32.totalorder %s16, 0
      %p104 = por %p102, %p103
      %p105 = scmp.ne.s32.totalorder %s94, %s97
      %p106 = scmp.eq.s32.totalorder %s21, 3
      %p107 = por %p105, %p106
      %p108 = scmp.ne.s32.totalorder %s97, %s98
      %p109 = scmp.eq.s32.totalorder %s21, 0
      %p110 = por %p108, %p109
      %p111 = scmp.ne.s32.totalorder %s97, %s98
      %p112 = scmp.eq.s32.totalorder %s22, 3
      %p113 = por %p111, %p112
      %p115 = scmp.ne.s32.totalorder %s98, %s114
      %p116 = scmp.eq.s32.totalorder %s22, 0
      %p117 = por %p115, %p116
      %s118 = ssub.s32 %s23, %s35
      %p119 = scmp.eq.s32.totalorder %s118, 0
      %s121 = sadd.s32 %s120, 1
      %s122 = scalar_select %p119, %s120, %s121
      %p125 = pneg %p119
      %p126 = scmp.eq.s32.totalorder %s16, 3
      %p127 = por %p125, %p126
      %p128 = scmp.ne.s32.totalorder %s120, %s123
      %p129 = scmp.eq.s32.totalorder %s16, 0
      %p130 = por %p128, %p129
      %p131 = scmp.ne.s32.totalorder %s120, %s123
      %p132 = scmp.eq.s32.totalorder %s21, 3
      %p133 = por %p131, %p132
      %p134 = scmp.ne.s32.totalorder %s123, %s124
      %p135 = scmp.eq.s32.totalorder %s21, 0
      %p136 = por %p134, %p135
      %p137 = scmp.ne.s32.totalorder %s123, %s124
      %p138 = scmp.eq.s32.totalorder %s22, 3
      %p139 = por %p137, %p138
      %p141 = scmp.ne.s32.totalorder %s124, %s140
      %p142 = scmp.eq.s32.totalorder %s22, 0
      %p143 = por %p141, %p142
      %s145 = sadd.s32 %s144, 1
      %p148 = scmp.eq.s32.totalorder %s16, 3
      %p149 = scmp.ne.s32.totalorder %s144, %s146
      %p150 = scmp.eq.s32.totalorder %s16, 0
      %p151 = por %p149, %p150
      %p152 = scmp.ne.s32.totalorder %s144, %s146
      %p153 = scmp.eq.s32.totalorder %s21, 3
      %p154 = por %p152, %p153
      %p155 = scmp.ne.s32.totalorder %s146, %s147
      %p156 = scmp.eq.s32.totalorder %s21, 0
      %p157 = por %p155, %p156
      %p158 = scmp.ne.s32.totalorder %s146, %s147
      %p159 = scmp.eq.s32.totalorder %s22, 3
      %p160 = por %p158, %p159
      %p162 = scmp.ne.s32.totalorder %s147, %s161
      %p163 = scmp.eq.s32.totalorder %s22, 0
      %p164 = por %p162, %p163
      %s166 = sadd.s32 %s165, 1
      %p169 = scmp.eq.s32.totalorder %s16, 3
      %p170 = scmp.ne.s32.totalorder %s165, %s167
      %p171 = scmp.eq.s32.totalorder %s16, 0
      %p172 = por %p170, %p171
      %p173 = scmp.ne.s32.totalorder %s165, %s167
      %p174 = scmp.eq.s32.totalorder %s21, 3
      %p175 = por %p173, %p174
      %p176 = scmp.ne.s32.totalorder %s167, %s168
      %p177 = scmp.eq.s32.totalorder %s21, 0
      %p178 = por %p176, %p177
      %p179 = scmp.ne.s32.totalorder %s167, %s168
      %p180 = scmp.eq.s32.totalorder %s22, 3
      %p181 = por %p179, %p180
      %p183 = scmp.ne.s32.totalorder %s168, %s182
      %p184 = scmp.eq.s32.totalorder %s22, 0
      %p185 = por %p183, %p184
      %s187 = sadd.s32 %s186, 1
      %p190 = scmp.eq.s32.totalorder %s16, 3
      %p191 = scmp.ne.s32.totalorder %s186, %s188
      %p192 = scmp.eq.s32.totalorder %s16, 0
      %p193 = por %p191, %p192
      %p194 = scmp.ne.s32.totalorder %s186, %s188
      %p195 = scmp.eq.s32.totalorder %s21, 3
      %p196 = por %p194, %p195
      %p197 = scmp.ne.s32.totalorder %s188, %s189
      %p198 = scmp.eq.s32.totalorder %s21, 0
      %p199 = por %p197, %p198
      %p200 = scmp.ne.s32.totalorder %s188, %s189
      %p201 = scmp.eq.s32.totalorder %s22, 3
      %p202 = por %p200, %p201
      %p204 = scmp.ne.s32.totalorder %s189, %s203
      %p205 = scmp.eq.s32.totalorder %s22, 0
      %p206 = por %p204, %p205
      %s207 = ssub.s32 %s23, %s35
      %s208 = ssub.s32 %s24, %s31
      %s209 = sor.u32 %s207, %s208
      %p210 = scmp.eq.s32.totalorder %s209, 0
      %s212 = sadd.s32 %s211, 1
      %s213 = scalar_select %p210, %s211, %s212
      %p216 = pneg %p210
      %p217 = scmp.eq.s32.totalorder %s16, 3
      %p218 = por %p216, %p217
      %p219 = scmp.ne.s32.totalorder %s211, %s214
      %p220 = scmp.eq.s32.totalorder %s16, 0
      %p221 = por %p219, %p220
      %p222 = scmp.ne.s32.totalorder %s211, %s214
      %p223 = scmp.eq.s32.totalorder %s21, 3
      %p224 = por %p222, %p223
      %p225 = scmp.ne.s32.totalorder %s214, %s215
      %p226 = scmp.eq.s32.totalorder %s21, 0
      %p227 = por %p225, %p226
      %p228 = scmp.ne.s32.totalorder %s214, %s215
      %p229 = scmp.eq.s32.totalorder %s22, 3
      %p230 = por %p228, %p229
      %p232 = scmp.ne.s32.totalorder %s215, %s231
      %p233 = scmp.eq.s32.totalorder %s22, 0
      %p234 = por %p232, %p233
      %p235 = scmp.le.s32.totalorder 1, %s16
      %p236 = scmp.lt.s32.totalorder %s16, 5
      %p237 = pnand %p235, %p236
      %p238 = pneg %p237
      // Predicated region
      $region9: #{pointnet_fp_pointconv.1} parent=5 // pred_check
        _
      $region10: #{pointnet_fp_pointconv.1} parent=5 // pred_check_branch
        %240 = sbr.rel (%p237) target = $region12
      $region11: #{pointnet_fp_pointconv.1} parent=5 // pred_region
        %s241 = ssub.s32 %s16, 1
        // Predicated region
        $region13: #{pointnet_fp_pointconv.1} parent=11 // pred_check
          %p242 = pneg %p157
        $region14: #{pointnet_fp_pointconv.1} parent=11 // pred_check_branch
          %244 = sbr.rel (%p242) target = $region16
        $region15: #{pointnet_fp_pointconv.1} parent=11 // pred_region
          _
        $region16: #{pointnet_fp_pointconv.1} parent=11 // pred_fallthru
          _
        // Predicated region
        $region17: #{pointnet_fp_pointconv.1} parent=11 // pred_check
          %p245 = pneg %p178
        $region18: #{pointnet_fp_pointconv.1} parent=11 // pred_check_branch
          %247 = sbr.rel (%p245) target = $region20
        $region19: #{pointnet_fp_pointconv.1} parent=11 // pred_region
          _
        $region20: #{pointnet_fp_pointconv.1} parent=11 // pred_fallthru
          _
        // Predicated region
        $region21: #{pointnet_fp_pointconv.1} parent=11 // pred_check
          %p248 = pneg %p199
        $region22: #{pointnet_fp_pointconv.1} parent=11 // pred_check_branch
          %250 = sbr.rel (%p248) target = $region24
        $region23: #{pointnet_fp_pointconv.1} parent=11 // pred_region
          _
        $region24: #{pointnet_fp_pointconv.1} parent=11 // pred_fallthru
          _
      $region12: #{pointnet_fp_pointconv.1} parent=5 // pred_fallthru
        _
      %p251 = scmp.lt.s32.totalorder %s16, 4
      // Predicated region
      $region25: #{pointnet_fp_pointconv.1} parent=5 // pred_check
        %p252 = pneg %p251
      $region26: #{pointnet_fp_pointconv.1} parent=5 // pred_check_branch
        %254 = sbr.rel (%p252) target = $region28
      $region27: #{pointnet_fp_pointconv.1} parent=5 // pred_region
        // Predicated region
        $region29: #{pointnet_fp_pointconv.1} parent=27 // pred_check
          %p255 = pneg %p50
        $region30: #{pointnet_fp_pointconv.1} parent=27 // pred_check_branch
          %257 = sbr.rel (%p255) target = $region32
        $region31: #{pointnet_fp_pointconv.1} parent=27 // pred_region
          %p258 = scmp.lt.s32.totalorder %s23, 1
          %s259 = scalar_select %p258, %s23, 1
          %p260 = scmp.lt.s32.totalorder %s24, 1
          %s261 = scalar_select %p260, %s24, 1
          %s262 = smul.addr %s259, 2
          %s263 = sadd.s32 %s261, %s262
          %s264 = smul.addr %s263, 4
          %s265 = scalar_lea.vmem %s0, %s264
        $region32: #{pointnet_fp_pointconv.1} parent=27 // pred_fallthru
          _
        // Predicated region
        $region33: #{pointnet_fp_pointconv.1} parent=27 // pred_check
          %p266 = pneg %p76
        $region34: #{pointnet_fp_pointconv.1} parent=27 // pred_check_branch
          %268 = sbr.rel (%p266) target = $region36
        $region35: #{pointnet_fp_pointconv.1} parent=27 // pred_region
          %p269 = scmp.lt.s32.totalorder %s23, 1
          %s270 = scalar_select %p269, %s23, 1
          %s271 = smul.addr %s270, 8
          %s272 = smul.addr %s271, 8
          %s273 = scalar_lea.vmem %s1, %s272
        $region36: #{pointnet_fp_pointconv.1} parent=27 // pred_fallthru
          _
        // Predicated region
        $region37: #{pointnet_fp_pointconv.1} parent=27 // pred_check
          %p274 = pneg %p104
        $region38: #{pointnet_fp_pointconv.1} parent=27 // pred_check_branch
          %276 = sbr.rel (%p274) target = $region40
        $region39: #{pointnet_fp_pointconv.1} parent=27 // pred_region
          %s277 = sand.u32 %s94, 1
          %s278 = sand.u32 %s94, 1
          %s279 = smul.addr %s278, 8
          %s280 = scalar_lea.vmem [#allocation2], %s279
          %s281 = smul.addr %s23, 4
          %s282 = sadd.s32 %s24, %s281
          %s283 = smul.addr %s282, 4
          %s284 = scalar_lea.vmem %s2, %s283
          // Predicated region
          $region41: #{pointnet_fp_pointconv.1} parent=39 // pred_check
            _
          $region42: #{pointnet_fp_pointconv.1} parent=39 // pred_check_branch
            %286 = sbr.rel (0) target = $region44
          $region43: #{pointnet_fp_pointconv.1} parent=39 // pred_region
            // Predicated region
            $region45: #{pointnet_fp_pointconv.1} parent=43 // pred_check
              _
            $region46: #{pointnet_fp_pointconv.1} parent=43 // pred_check_branch
              %288 = sbr.rel target = $region48
            $region47: #{pointnet_fp_pointconv.1} parent=43 // pred_region
              // Predicated region
              $region60: #{pointnet_fp_pointconv.1} parent=47 // pred_check
                _
              $region61: #{pointnet_fp_pointconv.1} parent=47 // pred_check_branch
                %306 = sbr.rel (0) target = $region63
              $region62: #{pointnet_fp_pointconv.1} parent=47 // pred_region
                loop: start=0, step=1, limit=1
                $region64: #{pointnet_fp_pointconv.1} parent=62 // loop_pre_header
                  _
                $region65: #{pointnet_fp_pointconv.1} parent=62 // loop_header
                  %s308 = sphi 0, %s312
                  %p309 = scmp.ge.s32.totalorder %s308, 1
                  %s313 = sphi %s284, %s284
                  %s314 = sphi %s280, %s280
                $region66: #{pointnet_fp_pointconv.1} parent=62 // loop_header_branch
                  %311 = sbr.rel (%p309) target = $region70
                $region67: #{pointnet_fp_pointconv.1} parent=62 // loop_body
                  _
                $region68: #{pointnet_fp_pointconv.1} parent=62 // loop_footer
                  %s312 = sadd.s32 1, %s308
                $region69: #{pointnet_fp_pointconv.1} parent=62 // loop_footer_branch
                  %307 = sbr.rel target = $region65
                $region70: #{pointnet_fp_pointconv.1} parent=62 // loop_exit
                  _
                %s316 = ssub.s32 16, 1
                loop: start=0, step=1, limit=1
                $region71: #{pointnet_fp_pointconv.1} parent=62 // loop_pre_header
                  _
                $region72: #{pointnet_fp_pointconv.1} parent=62 // loop_header
                  %s318 = sphi 0, %s322
                  %p319 = scmp.ge.s32.totalorder %s318, 1
                  %s323 = sphi %s284, %s284
                  %s324 = sphi %s280, %s280
                $region73: #{pointnet_fp_pointconv.1} parent=62 // loop_header_branch
                  %321 = sbr.rel (%p319) target = $region77
                $region74: #{pointnet_fp_pointconv.1} parent=62 // loop_body
                  %v325 = vld [vmem:[%s323] sm:%s316]
                  %326 = vst [vmem:[%s324] sm:%s316] %v325
                  %v327 = vld [vmem:[%s323 + $0x8] sm:%s316]
                  %328 = vst [vmem:[%s324 + $0x4] sm:%s316] %v327
                $region75: #{pointnet_fp_pointconv.1} parent=62 // loop_footer
                  %s322 = sadd.s32 1, %s318
                $region76: #{pointnet_fp_pointconv.1} parent=62 // loop_footer_branch
                  %317 = sbr.rel target = $region72
                $region77: #{pointnet_fp_pointconv.1} parent=62 // loop_exit
                  _
              $region63: #{pointnet_fp_pointconv.1} parent=47 // pred_fallthru
                _
            $region48: #{pointnet_fp_pointconv.1} parent=43 // pred_fallthru
              _
            // Predicated region
            $region49: #{pointnet_fp_pointconv.1} parent=43 // pred_check
              _
            $region50: #{pointnet_fp_pointconv.1} parent=43 // pred_check_branch
              %290 = sbr.rel (0) target = $region52
            $region51: #{pointnet_fp_pointconv.1} parent=43 // pred_region
              %s292 = ssub.s32 16, 1
              loop: start=0, step=1, limit=1
              $region53: #{pointnet_fp_pointconv.1} parent=51 // loop_pre_header
                _
              $region54: #{pointnet_fp_pointconv.1} parent=51 // loop_header
                %s294 = sphi 0, %s298
                %p295 = scmp.ge.s32.totalorder %s294, 1
                %s299 = sphi %s284, %s284
                %s300 = sphi %s280, %s280
              $region55: #{pointnet_fp_pointconv.1} parent=51 // loop_header_branch
                %297 = sbr.rel (%p295) target = $region59
              $region56: #{pointnet_fp_pointconv.1} parent=51 // loop_body
                %v301 = vld [vmem:[%s299] sm:%s292]
                %302 = vst [vmem:[%s300] sm:%s292] %v301
                %v303 = vld [vmem:[%s299 + $0x8] sm:%s292]
                %304 = vst [vmem:[%s300 + $0x4] sm:%s292] %v303
              $region57: #{pointnet_fp_pointconv.1} parent=51 // loop_footer
                %s298 = sadd.s32 1, %s294
              $region58: #{pointnet_fp_pointconv.1} parent=51 // loop_footer_branch
                %293 = sbr.rel target = $region54
              $region59: #{pointnet_fp_pointconv.1} parent=51 // loop_exit
                _
            $region52: #{pointnet_fp_pointconv.1} parent=43 // pred_fallthru
              _
          $region44: #{pointnet_fp_pointconv.1} parent=39 // pred_fallthru
            _
          %329 = vnop
        $region40: #{pointnet_fp_pointconv.1} parent=27 // pred_fallthru
          _
        // Predicated region
        $region78: #{pointnet_fp_pointconv.1} parent=27 // pred_check
          %p330 = pneg %p130
        $region79: #{pointnet_fp_pointconv.1} parent=27 // pred_check_branch
          %332 = sbr.rel (%p330) target = $region81
        $region80: #{pointnet_fp_pointconv.1} parent=27 // pred_region
          %p333 = scmp.lt.s32.totalorder %s23, 1
          %s334 = scalar_select %p333, %s23, 1
          %s335 = smul.addr %s334, 4
          %s336 = smul.addr %s335, 4
          %s337 = scalar_lea.vmem %s3, %s336
        $region81: #{pointnet_fp_pointconv.1} parent=27 // pred_fallthru
          _
      $region28: #{pointnet_fp_pointconv.1} parent=5 // pred_fallthru
        _
      %p338 = scmp.le.s32.totalorder 1, %s16
      %p339 = scmp.lt.s32.totalorder %s16, 5
      %p340 = pnand %p338, %p339
      %p341 = pneg %p340
      // Predicated region
      $region82: #{pointnet_fp_pointconv.1} parent=5 // pred_check
        _
      $region83: #{pointnet_fp_pointconv.1} parent=5 // pred_check_branch
        %343 = sbr.rel (%p340) target = $region85
      $region84: #{pointnet_fp_pointconv.1} parent=5 // pred_region
        %s344 = ssub.s32 %s16, 1
        %s345 = sand.u32 %s97, 1
        %s346 = sand.u32 %s97, 1
        %s347 = smul.addr %s346, 8
        %s348 = scalar_lea.vmem [#allocation2], %s347
        // Predicated region
        $region86: #{pointnet_fp_pointconv.1} parent=84 // pred_check
          %p349 = pneg %p110
        $region87: #{pointnet_fp_pointconv.1} parent=84 // pred_check_branch
          %351 = sbr.rel (%p349) target = $region89
        $region88: #{pointnet_fp_pointconv.1} parent=84 // pred_region
          _
        $region89: #{pointnet_fp_pointconv.1} parent=84 // pred_fallthru
          _
        %p352 = scmp.lt.s32.totalorder %s25, 1
        %s353 = scalar_select %p352, %s25, 1
        %p354 = scmp.lt.s32.totalorder %s26, 1
        %s355 = scalar_select %p354, %s26, 1
        %s356 = smul.addr %s353, 2
        %s357 = sadd.s32 %s355, %s356
        %s358 = smul.addr %s357, 4
        %s359 = scalar_lea.vmem %s0, %s358
        %p360 = pneg %p56
        %p361 = pneg %p53
        %p362 = scmp.lt.s32.totalorder %s25, 1
        %s363 = scalar_select %p362, %s25, 1
        %s364 = smul.addr %s363, 8
        %s365 = smul.addr %s364, 8
        %s366 = scalar_lea.vmem %s1, %s365
        %p367 = pneg %p82
        %p368 = pneg %p79
        %s369 = sand.u32 %s97, 1
        %s370 = sand.u32 %s97, 1
        %s371 = smul.addr %s370, 8
        %s372 = scalar_lea.vmem [#allocation2], %s371
        %p373 = pneg %p110
        %p374 = pneg %p107
        %p375 = scmp.lt.s32.totalorder %s25, 1
        %s376 = scalar_select %p375, %s25, 1
        %s377 = smul.addr %s376, 4
        %s378 = smul.addr %s377, 4
        %s379 = scalar_lea.vmem %s3, %s378
        %p380 = pneg %p136
        %p381 = pneg %p133
        %p382 = pneg %p157
        %p383 = pneg %p154
        %p384 = pneg %p178
        %p385 = pneg %p175
        %p386 = pneg %p199
        %p387 = pneg %p196
        %p388 = pneg %p227
        %p389 = pneg %p224
        %s390 = sand.u32 %s214, 1
        %s391 = scalar_lea.sflag [#allocation4], %s390
        %s392 = sand.u32 %s214, 1
        %s393 = smul.addr %s392, 64
        %s394 = scalar_lea.vmem [#allocation3], %s393
        %p395 = scmp.lt.s32.totalorder %s25, 1
        %s396 = scalar_select %p395, %s25, 1
        %p397 = scmp.lt.s32.totalorder %s26, 1
        %s398 = scalar_select %p397, %s26, 1
        %s399 = smul.addr %s396, 2
        %s400 = sadd.s32 %s398, %s399
        %s401 = smul.addr %s400, 4
        %s402 = scalar_lea.vmem %s0, %s401
        %p403 = scmp.lt.s32.totalorder %s25, 1
        %s404 = scalar_select %p403, %s25, 1
        %s405 = smul.addr %s404, 8
        %s406 = smul.addr %s405, 8
        %s407 = scalar_lea.vmem %s1, %s406
        %p408 = scmp.lt.s32.totalorder %s25, 1
        %s409 = scalar_select %p408, %s25, 1
        %s410 = smul.addr %s409, 4
        %s411 = smul.addr %s410, 4
        %s412 = scalar_lea.vmem %s3, %s411
        %v414 = vld [vmem:[%s402] sm:$0x7]
        %v415 = vld [vmem:[%s407] sm:$0xff]
        %v416 = vld [vmem:[%s407 + $0x8] sm:$0xff]
        %v417 = vld [vmem:[%s407 + $0x10] sm:$0xff]
        %v418 = vld [vmem:[%s407 + $0x18] sm:$0xff]
        %v419 = vld [vmem:[%s407 + $0x20] sm:$0xff]
        %v420 = vld [vmem:[%s407 + $0x28] sm:$0xff]
        %v421 = vld [vmem:[%s407 + $0x30] sm:$0xff]
        %v422 = vld [vmem:[%s407 + $0x38] sm:$0xff]
        %424 = vset.pattern.permute.xlu0 0
        %425 = vperm.xlu0 %424, %v415
        %v426 = vpop.permute.xlu0 %425
        %429 = vset.pattern.permute.xlu0 0
        %430 = vperm.xlu0 %429, %v416
        %v431 = vpop.permute.xlu0 %430
        %434 = vset.pattern.permute.xlu0 0
        %435 = vperm.xlu0 %434, %v417
        %v436 = vpop.permute.xlu0 %435
        %439 = vset.pattern.permute.xlu0 0
        %440 = vperm.xlu0 %439, %v418
        %v441 = vpop.permute.xlu0 %440
        %444 = vset.pattern.permute.xlu0 0
        %445 = vperm.xlu0 %444, %v419
        %v446 = vpop.permute.xlu0 %445
        %449 = vset.pattern.permute.xlu0 0
        %450 = vperm.xlu0 %449, %v420
        %v451 = vpop.permute.xlu0 %450
        %454 = vset.pattern.permute.xlu0 0
        %455 = vperm.xlu0 %454, %v421
        %v456 = vpop.permute.xlu0 %455
        %459 = vset.pattern.permute.xlu0 0
        %460 = vperm.xlu0 %459, %v422
        %v461 = vpop.permute.xlu0 %460
        %v463 = vperm.slane %v414, 0
        %v464 = vsub.f32 %v426, %v463
        %v465 = vsub.f32 %v431, %v463
        %v466 = vsub.f32 %v436, %v463
        %v467 = vsub.f32 %v441, %v463
        %v468 = vsub.f32 %v446, %v463
        %v469 = vsub.f32 %v451, %v463
        %v470 = vsub.f32 %v456, %v463
        %v471 = vsub.f32 %v461, %v463
        %v472 = vmul.f32 %v464, %v464
        %v473 = vmul.f32 %v465, %v465
        %v474 = vmul.f32 %v466, %v466
        %v475 = vmul.f32 %v467, %v467
        %v476 = vmul.f32 %v468, %v468
        %v477 = vmul.f32 %v469, %v469
        %v478 = vmul.f32 %v470, %v470
        %v479 = vmul.f32 %v471, %v471
        %v480 = vadd.f32 %v472, 0.0
        %v481 = vadd.f32 %v473, 0.0
        %v482 = vadd.f32 %v474, 0.0
        %v483 = vadd.f32 %v475, 0.0
        %v484 = vadd.f32 %v476, 0.0
        %v485 = vadd.f32 %v477, 0.0
        %v486 = vadd.f32 %v478, 0.0
        %v487 = vadd.f32 %v479, 0.0
        %488 = vset.pattern.permute.xlu0 1
        %489 = vperm.xlu0 %488, %v415
        %v490 = vpop.permute.xlu0 %489
        %492 = vset.pattern.permute.xlu0 1
        %493 = vperm.xlu0 %492, %v416
        %v494 = vpop.permute.xlu0 %493
        %496 = vset.pattern.permute.xlu0 1
        %497 = vperm.xlu0 %496, %v417
        %v498 = vpop.permute.xlu0 %497
        %500 = vset.pattern.permute.xlu0 1
        %501 = vperm.xlu0 %500, %v418
        %v502 = vpop.permute.xlu0 %501
        %504 = vset.pattern.permute.xlu0 1
        %505 = vperm.xlu0 %504, %v419
        %v506 = vpop.permute.xlu0 %505
        %508 = vset.pattern.permute.xlu0 1
        %509 = vperm.xlu0 %508, %v420
        %v510 = vpop.permute.xlu0 %509
        %512 = vset.pattern.permute.xlu0 1
        %513 = vperm.xlu0 %512, %v421
        %v514 = vpop.permute.xlu0 %513
        %516 = vset.pattern.permute.xlu0 1
        %517 = vperm.xlu0 %516, %v422
        %v518 = vpop.permute.xlu0 %517
        %v520 = vperm.slane %v414, 1
        %v521 = vsub.f32 %v490, %v520
        %v522 = vsub.f32 %v494, %v520
        %v523 = vsub.f32 %v498, %v520
        %v524 = vsub.f32 %v502, %v520
        %v525 = vsub.f32 %v506, %v520
        %v526 = vsub.f32 %v510, %v520
        %v527 = vsub.f32 %v514, %v520
        %v528 = vsub.f32 %v518, %v520
        %v529 = vmul.f32 %v521, %v521
        %v530 = vmul.f32 %v522, %v522
        %v531 = vmul.f32 %v523, %v523
        %v532 = vmul.f32 %v524, %v524
        %v533 = vmul.f32 %v525, %v525
        %v534 = vmul.f32 %v526, %v526
        %v535 = vmul.f32 %v527, %v527
        %v536 = vmul.f32 %v528, %v528
        %v537 = vadd.f32 %v480, %v529
        %v538 = vadd.f32 %v481, %v530
        %v539 = vadd.f32 %v482, %v531
        %v540 = vadd.f32 %v483, %v532
        %v541 = vadd.f32 %v484, %v533
        %v542 = vadd.f32 %v485, %v534
        %v543 = vadd.f32 %v486, %v535
        %v544 = vadd.f32 %v487, %v536
        %545 = vset.pattern.permute.xlu0 2
        %546 = vperm.xlu0 %545, %v415
        %v547 = vpop.permute.xlu0 %546
        %549 = vset.pattern.permute.xlu0 2
        %550 = vperm.xlu0 %549, %v416
        %v551 = vpop.permute.xlu0 %550
        %553 = vset.pattern.permute.xlu0 2
        %554 = vperm.xlu0 %553, %v417
        %v555 = vpop.permute.xlu0 %554
        %557 = vset.pattern.permute.xlu0 2
        %558 = vperm.xlu0 %557, %v418
        %v559 = vpop.permute.xlu0 %558
        %561 = vset.pattern.permute.xlu0 2
        %562 = vperm.xlu0 %561, %v419
        %v563 = vpop.permute.xlu0 %562
        %565 = vset.pattern.permute.xlu0 2
        %566 = vperm.xlu0 %565, %v420
        %v567 = vpop.permute.xlu0 %566
        %569 = vset.pattern.permute.xlu0 2
        %570 = vperm.xlu0 %569, %v421
        %v571 = vpop.permute.xlu0 %570
        %573 = vset.pattern.permute.xlu0 2
        %574 = vperm.xlu0 %573, %v422
        %v575 = vpop.permute.xlu0 %574
        %v577 = vperm.slane %v414, 2
        %v578 = vsub.f32 %v547, %v577
        %v579 = vsub.f32 %v551, %v577
        %v580 = vsub.f32 %v555, %v577
        %v581 = vsub.f32 %v559, %v577
        %v582 = vsub.f32 %v563, %v577
        %v583 = vsub.f32 %v567, %v577
        %v584 = vsub.f32 %v571, %v577
        %v585 = vsub.f32 %v575, %v577
        %v586 = vmul.f32 %v578, %v578
        %v587 = vmul.f32 %v579, %v579
        %v588 = vmul.f32 %v580, %v580
        %v589 = vmul.f32 %v581, %v581
        %v590 = vmul.f32 %v582, %v582
        %v591 = vmul.f32 %v583, %v583
        %v592 = vmul.f32 %v584, %v584
        %v593 = vmul.f32 %v585, %v585
        %v594 = vadd.f32 %v537, %v586
        %v595 = vadd.f32 %v538, %v587
        %v596 = vadd.f32 %v539, %v588
        %v597 = vadd.f32 %v540, %v589
        %v598 = vadd.f32 %v541, %v590
        %v599 = vadd.f32 %v542, %v591
        %v600 = vadd.f32 %v543, %v592
        %v601 = vadd.f32 %v544, %v593
        %v602 = vlaneseq
        %v603 = vshrl.u32 %v602, 7
        %v604 = vadd.s32 %v603, 8
        %v605 = vadd.s32 %v603, 16
        %v606 = vadd.s32 %v603, 24
        %v607 = vadd.s32 %v603, 32
        %v608 = vadd.s32 %v603, 40
        %v609 = vadd.s32 %v603, 48
        %v610 = vadd.s32 %v603, 56
        %v611 = vmin.f32 %v594, %v598
        %v612 = vmin.f32 %v595, %v599
        %v613 = vmin.f32 %v596, %v600
        %v614 = vmin.f32 %v597, %v601
        %v615 = vmin.f32 %v611, %v612
        %v616 = vmin.f32 %v613, %v614
        %v617 = vmin.f32 %v615, %v616
        %v618 = vrot.slane %v617, 4
        %v619 = vmin.f32 %v617, %v618
        %v620 = vrot.slane %v619, 2
        %v621 = vmin.f32 %v619, %v620
        %v622 = vrot.slane %v621, 1
        %v623 = vmin.f32 %v621, %v622
        %vm624 = vcmp.eq.f32.partialorder %v594, %v623
        %vm625 = vcmp.eq.f32.partialorder %v595, %v623
        %vm626 = vcmp.eq.f32.partialorder %v596, %v623
        %vm627 = vcmp.eq.f32.partialorder %v597, %v623
        %vm628 = vcmp.eq.f32.partialorder %v598, %v623
        %vm629 = vcmp.eq.f32.partialorder %v599, %v623
        %vm630 = vcmp.eq.f32.partialorder %v600, %v623
        %vm631 = vcmp.eq.f32.partialorder %v601, %v623
        %v632 = vsel %vm624, %v603, 64
        %v633 = vsel %vm625, %v604, 64
        %v634 = vsel %vm626, %v605, 64
        %v635 = vsel %vm627, %v606, 64
        %v636 = vsel %vm628, %v607, 64
        %v637 = vsel %vm629, %v608, 64
        %v638 = vsel %vm630, %v609, 64
        %v639 = vsel %vm631, %v610, 64
        %vm640 = vcmp.lt.s32.totalorder %v632, %v636
        %v641 = vsel %vm640, %v632, %v636
        %vm642 = vcmp.lt.s32.totalorder %v633, %v637
        %v643 = vsel %vm642, %v633, %v637
        %vm644 = vcmp.lt.s32.totalorder %v634, %v638
        %v645 = vsel %vm644, %v634, %v638
        %vm646 = vcmp.lt.s32.totalorder %v635, %v639
        %v647 = vsel %vm646, %v635, %v639
        %vm648 = vcmp.lt.s32.totalorder %v641, %v643
        %v649 = vsel %vm648, %v641, %v643
        %vm650 = vcmp.lt.s32.totalorder %v645, %v647
        %v651 = vsel %vm650, %v645, %v647
        %vm652 = vcmp.lt.s32.totalorder %v649, %v651
        %v653 = vsel %vm652, %v649, %v651
        %v654 = vrot.slane %v653, 4
        %vm655 = vcmp.lt.s32.totalorder %v653, %v654
        %v656 = vsel %vm655, %v653, %v654
        %v657 = vrot.slane %v656, 2
        %vm658 = vcmp.lt.s32.totalorder %v656, %v657
        %v659 = vsel %vm658, %v656, %v657
        %v660 = vrot.slane %v659, 1
        %vm661 = vcmp.lt.s32.totalorder %v659, %v660
        %v662 = vsel %vm661, %v659, %v660
        %vm663 = vcmp.eq.s32.totalorder %v603, %v662
        %vm664 = vcmp.eq.s32.totalorder %v604, %v662
        %vm665 = vcmp.eq.s32.totalorder %v605, %v662
        %vm666 = vcmp.eq.s32.totalorder %v606, %v662
        %vm667 = vcmp.eq.s32.totalorder %v607, %v662
        %vm668 = vcmp.eq.s32.totalorder %v608, %v662
        %vm669 = vcmp.eq.s32.totalorder %v609, %v662
        %vm670 = vcmp.eq.s32.totalorder %v610, %v662
        %v671 = vsel %vm663, 1, 0
        %v672 = vsel %vm664, 1, 0
        %v673 = vsel %vm665, 1, 0
        %v674 = vsel %vm666, 1, 0
        %v675 = vsel %vm667, 1, 0
        %v676 = vsel %vm668, 1, 0
        %v677 = vsel %vm669, 1, 0
        %v678 = vsel %vm670, 1, 0
        %v679 = vcvt.s32.f32 %v671
        %v680 = vcvt.s32.f32 %v672
        %v681 = vcvt.s32.f32 %v673
        %v682 = vcvt.s32.f32 %v674
        %v683 = vcvt.s32.f32 %v675
        %v684 = vcvt.s32.f32 %v676
        %v685 = vcvt.s32.f32 %v677
        %v686 = vcvt.s32.f32 %v678
        %v687 = vmax.f32 %v623, 1e-10
        %v688 = vrcp.pop %v687
        %v689 = vmul.f32 %v687, %v688
        %v690 = vsub.f32 1.0, %v689
        %v691 = vmul.f32 %v688, %v690
        %v692 = vadd.f32 %v688, %v691
        %vm693 = vweird.f32 %v687
        %vm694 = vweird.f32 %v688
        %vm695 = vmor %vm693, %vm694
        %v696 = vsel %vm695, %v688, %v692
        %v697 = vand.u32 2147483647, %v687
        %vm698 = vcmp.eq.f32.partialorder %v697, 8.507059e+37
        %v699 = vand.u32 %v687, 2147483648
        %v700 = vor.u32 1.1754944e-38, %v699
        %v701 = vsel %vm698, %v700, %v696
        %v702 = vmul.f32 %v679, %v701
        %v703 = vmul.f32 %v680, %v701
        %v704 = vmul.f32 %v681, %v701
        %v705 = vmul.f32 %v682, %v701
        %v706 = vmul.f32 %v683, %v701
        %v707 = vmul.f32 %v684, %v701
        %v708 = vmul.f32 %v685, %v701
        %v709 = vmul.f32 %v686, %v701
        %v710 = vadd.f32 %v702, 0.0
        %v711 = vadd.f32 %v703, 0.0
        %v712 = vadd.f32 %v704, 0.0
        %v713 = vadd.f32 %v705, 0.0
        %v714 = vadd.f32 %v706, 0.0
        %v715 = vadd.f32 %v707, 0.0
        %v716 = vadd.f32 %v708, 0.0
        %v717 = vadd.f32 %v709, 0.0
        %v718 = vadd.f32 %v701, 0.0
        %vm719 = vcmp.gt.f32.partialorder %v679, 0.0
        %vm720 = vcmp.gt.f32.partialorder %v680, 0.0
        %vm721 = vcmp.gt.f32.partialorder %v681, 0.0
        %vm722 = vcmp.gt.f32.partialorder %v682, 0.0
        %vm723 = vcmp.gt.f32.partialorder %v683, 0.0
        %vm724 = vcmp.gt.f32.partialorder %v684, 0.0
        %vm725 = vcmp.gt.f32.partialorder %v685, 0.0
        %vm726 = vcmp.gt.f32.partialorder %v686, 0.0
        %v727 = vsel %vm719, 3e+38, %v594
        %v728 = vsel %vm720, 3e+38, %v595
        %v729 = vsel %vm721, 3e+38, %v596
        %v730 = vsel %vm722, 3e+38, %v597
        %v731 = vsel %vm723, 3e+38, %v598
        %v732 = vsel %vm724, 3e+38, %v599
        %v733 = vsel %vm725, 3e+38, %v600
        %v734 = vsel %vm726, 3e+38, %v601
        %v735 = vmin.f32 %v727, %v731
        %v736 = vmin.f32 %v728, %v732
        %v737 = vmin.f32 %v729, %v733
        %v738 = vmin.f32 %v730, %v734
        %v739 = vmin.f32 %v735, %v736
        %v740 = vmin.f32 %v737, %v738
        %v741 = vmin.f32 %v739, %v740
        %v742 = vrot.slane %v741, 4
        %v743 = vmin.f32 %v741, %v742
        %v744 = vrot.slane %v743, 2
        %v745 = vmin.f32 %v743, %v744
        %v746 = vrot.slane %v745, 1
        %v747 = vmin.f32 %v745, %v746
        %vm748 = vcmp.eq.f32.partialorder %v727, %v747
        %vm749 = vcmp.eq.f32.partialorder %v728, %v747
        %vm750 = vcmp.eq.f32.partialorder %v729, %v747
        %vm751 = vcmp.eq.f32.partialorder %v730, %v747
        %vm752 = vcmp.eq.f32.partialorder %v731, %v747
        %vm753 = vcmp.eq.f32.partialorder %v732, %v747
        %vm754 = vcmp.eq.f32.partialorder %v733, %v747
        %vm755 = vcmp.eq.f32.partialorder %v734, %v747
        %v756 = vsel %vm748, %v603, 64
        %v757 = vsel %vm749, %v604, 64
        %v758 = vsel %vm750, %v605, 64
        %v759 = vsel %vm751, %v606, 64
        %v760 = vsel %vm752, %v607, 64
        %v761 = vsel %vm753, %v608, 64
        %v762 = vsel %vm754, %v609, 64
        %v763 = vsel %vm755, %v610, 64
        %vm764 = vcmp.lt.s32.totalorder %v756, %v760
        %v765 = vsel %vm764, %v756, %v760
        %vm766 = vcmp.lt.s32.totalorder %v757, %v761
        %v767 = vsel %vm766, %v757, %v761
        %vm768 = vcmp.lt.s32.totalorder %v758, %v762
        %v769 = vsel %vm768, %v758, %v762
        %vm770 = vcmp.lt.s32.totalorder %v759, %v763
        %v771 = vsel %vm770, %v759, %v763
        %vm772 = vcmp.lt.s32.totalorder %v765, %v767
        %v773 = vsel %vm772, %v765, %v767
        %vm774 = vcmp.lt.s32.totalorder %v769, %v771
        %v775 = vsel %vm774, %v769, %v771
        %vm776 = vcmp.lt.s32.totalorder %v773, %v775
        %v777 = vsel %vm776, %v773, %v775
        %v778 = vrot.slane %v777, 4
        %vm779 = vcmp.lt.s32.totalorder %v777, %v778
        %v780 = vsel %vm779, %v777, %v778
        %v781 = vrot.slane %v780, 2
        %vm782 = vcmp.lt.s32.totalorder %v780, %v781
        %v783 = vsel %vm782, %v780, %v781
        %v784 = vrot.slane %v783, 1
        %vm785 = vcmp.lt.s32.totalorder %v783, %v784
        %v786 = vsel %vm785, %v783, %v784
        %vm787 = vcmp.eq.s32.totalorder %v603, %v786
        %vm788 = vcmp.eq.s32.totalorder %v604, %v786
        %vm789 = vcmp.eq.s32.totalorder %v605, %v786
        %vm790 = vcmp.eq.s32.totalorder %v606, %v786
        %vm791 = vcmp.eq.s32.totalorder %v607, %v786
        %vm792 = vcmp.eq.s32.totalorder %v608, %v786
        %vm793 = vcmp.eq.s32.totalorder %v609, %v786
        %vm794 = vcmp.eq.s32.totalorder %v610, %v786
        %v795 = vsel %vm787, 1, 0
        %v796 = vsel %vm788, 1, 0
        %v797 = vsel %vm789, 1, 0
        %v798 = vsel %vm790, 1, 0
        %v799 = vsel %vm791, 1, 0
        %v800 = vsel %vm792, 1, 0
        %v801 = vsel %vm793, 1, 0
        %v802 = vsel %vm794, 1, 0
        %v803 = vcvt.s32.f32 %v795
        %v804 = vcvt.s32.f32 %v796
        %v805 = vcvt.s32.f32 %v797
        %v806 = vcvt.s32.f32 %v798
        %v807 = vcvt.s32.f32 %v799
        %v808 = vcvt.s32.f32 %v800
        %v809 = vcvt.s32.f32 %v801
        %v810 = vcvt.s32.f32 %v802
        %v811 = vmax.f32 %v747, 1e-10
        %v812 = vrcp.pop %v811
        %v813 = vmul.f32 %v811, %v812
        %v814 = vsub.f32 1.0, %v813
        %v815 = vmul.f32 %v812, %v814
        %v816 = vadd.f32 %v812, %v815
        %vm817 = vweird.f32 %v811
        %vm818 = vweird.f32 %v812
        %vm819 = vmor %vm817, %vm818
        %v820 = vsel %vm819, %v812, %v816
        %v821 = vand.u32 2147483647, %v811
        %vm822 = vcmp.eq.f32.partialorder %v821, 8.507059e+37
        %v823 = vand.u32 %v811, 2147483648
        %v824 = vor.u32 1.1754944e-38, %v823
        %v825 = vsel %vm822, %v824, %v820
        %v826 = vmul.f32 %v803, %v825
        %v827 = vmul.f32 %v804, %v825
        %v828 = vmul.f32 %v805, %v825
        %v829 = vmul.f32 %v806, %v825
        %v830 = vmul.f32 %v807, %v825
        %v831 = vmul.f32 %v808, %v825
        %v832 = vmul.f32 %v809, %v825
        %v833 = vmul.f32 %v810, %v825
        %v834 = vadd.f32 %v710, %v826
        %v835 = vadd.f32 %v711, %v827
        %v836 = vadd.f32 %v712, %v828
        %v837 = vadd.f32 %v713, %v829
        %v838 = vadd.f32 %v714, %v830
        %v839 = vadd.f32 %v715, %v831
        %v840 = vadd.f32 %v716, %v832
        %v841 = vadd.f32 %v717, %v833
        %v842 = vadd.f32 %v718, %v825
        %vm843 = vcmp.gt.f32.partialorder %v803, 0.0
        %vm844 = vcmp.gt.f32.partialorder %v804, 0.0
        %vm845 = vcmp.gt.f32.partialorder %v805, 0.0
        %vm846 = vcmp.gt.f32.partialorder %v806, 0.0
        %vm847 = vcmp.gt.f32.partialorder %v807, 0.0
        %vm848 = vcmp.gt.f32.partialorder %v808, 0.0
        %vm849 = vcmp.gt.f32.partialorder %v809, 0.0
        %vm850 = vcmp.gt.f32.partialorder %v810, 0.0
        %v851 = vsel %vm843, 3e+38, %v727
        %v852 = vsel %vm844, 3e+38, %v728
        %v853 = vsel %vm845, 3e+38, %v729
        %v854 = vsel %vm846, 3e+38, %v730
        %v855 = vsel %vm847, 3e+38, %v731
        %v856 = vsel %vm848, 3e+38, %v732
        %v857 = vsel %vm849, 3e+38, %v733
        %v858 = vsel %vm850, 3e+38, %v734
        %v859 = vmin.f32 %v851, %v855
        %v860 = vmin.f32 %v852, %v856
        %v861 = vmin.f32 %v853, %v857
        %v862 = vmin.f32 %v854, %v858
        %v863 = vmin.f32 %v859, %v860
        %v864 = vmin.f32 %v861, %v862
        %v865 = vmin.f32 %v863, %v864
        %v866 = vrot.slane %v865, 4
        %v867 = vmin.f32 %v865, %v866
        %v868 = vrot.slane %v867, 2
        %v869 = vmin.f32 %v867, %v868
        %v870 = vrot.slane %v869, 1
        %v871 = vmin.f32 %v869, %v870
        %vm872 = vcmp.eq.f32.partialorder %v851, %v871
        %vm873 = vcmp.eq.f32.partialorder %v852, %v871
        %vm874 = vcmp.eq.f32.partialorder %v853, %v871
        %vm875 = vcmp.eq.f32.partialorder %v854, %v871
        %vm876 = vcmp.eq.f32.partialorder %v855, %v871
        %vm877 = vcmp.eq.f32.partialorder %v856, %v871
        %vm878 = vcmp.eq.f32.partialorder %v857, %v871
        %vm879 = vcmp.eq.f32.partialorder %v858, %v871
        %v880 = vsel %vm872, %v603, 64
        %v881 = vsel %vm873, %v604, 64
        %v882 = vsel %vm874, %v605, 64
        %v883 = vsel %vm875, %v606, 64
        %v884 = vsel %vm876, %v607, 64
        %v885 = vsel %vm877, %v608, 64
        %v886 = vsel %vm878, %v609, 64
        %v887 = vsel %vm879, %v610, 64
        %vm888 = vcmp.lt.s32.totalorder %v880, %v884
        %v889 = vsel %vm888, %v880, %v884
        %vm890 = vcmp.lt.s32.totalorder %v881, %v885
        %v891 = vsel %vm890, %v881, %v885
        %vm892 = vcmp.lt.s32.totalorder %v882, %v886
        %v893 = vsel %vm892, %v882, %v886
        %vm894 = vcmp.lt.s32.totalorder %v883, %v887
        %v895 = vsel %vm894, %v883, %v887
        %vm896 = vcmp.lt.s32.totalorder %v889, %v891
        %v897 = vsel %vm896, %v889, %v891
        %vm898 = vcmp.lt.s32.totalorder %v893, %v895
        %v899 = vsel %vm898, %v893, %v895
        %vm900 = vcmp.lt.s32.totalorder %v897, %v899
        %v901 = vsel %vm900, %v897, %v899
        %v902 = vrot.slane %v901, 4
        %vm903 = vcmp.lt.s32.totalorder %v901, %v902
        %v904 = vsel %vm903, %v901, %v902
        %v905 = vrot.slane %v904, 2
        %vm906 = vcmp.lt.s32.totalorder %v904, %v905
        %v907 = vsel %vm906, %v904, %v905
        %v908 = vrot.slane %v907, 1
        %vm909 = vcmp.lt.s32.totalorder %v907, %v908
        %v910 = vsel %vm909, %v907, %v908
        %vm911 = vcmp.eq.s32.totalorder %v603, %v910
        %vm912 = vcmp.eq.s32.totalorder %v604, %v910
        %vm913 = vcmp.eq.s32.totalorder %v605, %v910
        %vm914 = vcmp.eq.s32.totalorder %v606, %v910
        %vm915 = vcmp.eq.s32.totalorder %v607, %v910
        %vm916 = vcmp.eq.s32.totalorder %v608, %v910
        %vm917 = vcmp.eq.s32.totalorder %v609, %v910
        %vm918 = vcmp.eq.s32.totalorder %v610, %v910
        %v919 = vsel %vm911, 1, 0
        %v920 = vsel %vm912, 1, 0
        %v921 = vsel %vm913, 1, 0
        %v922 = vsel %vm914, 1, 0
        %v923 = vsel %vm915, 1, 0
        %v924 = vsel %vm916, 1, 0
        %v925 = vsel %vm917, 1, 0
        %v926 = vsel %vm918, 1, 0
        %v927 = vcvt.s32.f32 %v919
        %v928 = vcvt.s32.f32 %v920
        %v929 = vcvt.s32.f32 %v921
        %v930 = vcvt.s32.f32 %v922
        %v931 = vcvt.s32.f32 %v923
        %v932 = vcvt.s32.f32 %v924
        %v933 = vcvt.s32.f32 %v925
        %v934 = vcvt.s32.f32 %v926
        %v935 = vmax.f32 %v871, 1e-10
        %v936 = vrcp.pop %v935
        %v937 = vmul.f32 %v935, %v936
        %v938 = vsub.f32 1.0, %v937
        %v939 = vmul.f32 %v936, %v938
        %v940 = vadd.f32 %v936, %v939
        %vm941 = vweird.f32 %v935
        %vm942 = vweird.f32 %v936
        %vm943 = vmor %vm941, %vm942
        %v944 = vsel %vm943, %v936, %v940
        %v945 = vand.u32 2147483647, %v935
        %vm946 = vcmp.eq.f32.partialorder %v945, 8.507059e+37
        %v947 = vand.u32 %v935, 2147483648
        %v948 = vor.u32 1.1754944e-38, %v947
        %v949 = vsel %vm946, %v948, %v944
        %v950 = vmul.f32 %v927, %v949
        %v951 = vmul.f32 %v928, %v949
        %v952 = vmul.f32 %v929, %v949
        %v953 = vmul.f32 %v930, %v949
        %v954 = vmul.f32 %v931, %v949
        %v955 = vmul.f32 %v932, %v949
        %v956 = vmul.f32 %v933, %v949
        %v957 = vmul.f32 %v934, %v949
        %v958 = vadd.f32 %v834, %v950
        %v959 = vadd.f32 %v835, %v951
        %v960 = vadd.f32 %v836, %v952
        %v961 = vadd.f32 %v837, %v953
        %v962 = vadd.f32 %v838, %v954
        %v963 = vadd.f32 %v839, %v955
        %v964 = vadd.f32 %v840, %v956
        %v965 = vadd.f32 %v841, %v957
        %v966 = vadd.f32 %v842, %v949
        %v967 = vrcp.pop %v966
        %v968 = vmul.f32 %v966, %v967
        %v969 = vsub.f32 1.0, %v968
        %v970 = vmul.f32 %v967, %v969
        %v971 = vadd.f32 %v967, %v970
        %vm972 = vweird.f32 %v966
        %vm973 = vweird.f32 %v967
        %vm974 = vmor %vm972, %vm973
        %v975 = vsel %vm974, %v967, %v971
        %v976 = vand.u32 2147483647, %v966
        %vm977 = vcmp.eq.f32.partialorder %v976, 8.507059e+37
        %v978 = vand.u32 %v966, 2147483648
        %v979 = vor.u32 1.1754944e-38, %v978
        %v980 = vsel %vm977, %v979, %v975
        %v981 = vmul.f32 %v958, %v980
        %v982 = vmul.f32 %v959, %v980
        %v983 = vmul.f32 %v960, %v980
        %v984 = vmul.f32 %v961, %v980
        %v985 = vmul.f32 %v962, %v980
        %v986 = vmul.f32 %v963, %v980
        %v987 = vmul.f32 %v964, %v980
        %v988 = vmul.f32 %v965, %v980
        %v989 = vld [vmem:[%s412] sm:$0xf]
        %v990 = vld [vmem:[%s412 + $0x4] sm:$0xf]
        %v991 = vld [vmem:[%s412 + $0x8] sm:$0xf]
        %v992 = vld [vmem:[%s412 + $0xc] sm:$0xf]
        %v993 = vunpack.c.l.bf16 %v989
        %v994 = vunpack.c.l.bf16 %v990
        %v995 = vunpack.c.l.bf16 %v991
        %v996 = vunpack.c.l.bf16 %v992
        %vm997 = vcmask 523264
        %v999 = vsel %vm997, %v993, 0
        %v1002 = vsel %vm997, %v994, 0
        %v1005 = vsel %vm997, %v995, 0
        %v1008 = vsel %vm997, %v996, 0
        %1010 = vmatpush.msra.mxu0 0.0
        %1011 = vmatpush.msra.mxu0 0.0
        %1012 = vmatpush.msra.mxu0 0.0
        %1013 = vmatpush.msra.mxu0 0.0
        %1014 = vmatpush.msra.mxu0 0.0
        %1015 = vmatpush.msra.mxu0 0.0
        %1016 = vmatpush.msra.mxu0 0.0
        %1017 = vmatpush.msra.mxu0 0.0
        %1018 = vmatpush.msra.mxu0 %v988
        %1019 = vmatpush.msra.mxu0 %v987
        %1020 = vmatpush.msra.mxu0 %v986
        %1021 = vmatpush.msra.mxu0 %v985
        %1022 = vmatpush.msra.mxu0 %v984
        %1023 = vmatpush.msra.mxu0 %v983
        %1024 = vmatpush.msra.mxu0 %v982
        %1025 = vmatpush.msra.mxu0 %v981
        %1026 = vmatmul.f32.gmra.mxu0 %v999
        %v1027 = vpop.f32.mrf.mxu0
        %v1028 = vadd.f32 0.0, %v1027
        %1029 = vmatmul.f32.gmra.mxu0 %v1002
        %v1030 = vpop.f32.mrf.mxu0
        %v1031 = vadd.f32 0.0, %v1030
        %1032 = vmatmul.f32.gmra.mxu0 %v1005
        %v1033 = vpop.f32.mrf.mxu0
        %v1034 = vadd.f32 0.0, %v1033
        %1035 = vmatmul.f32.gmra.mxu0 %v1008
        %v1036 = vpop.f32.mrf.mxu0
        %v1037 = vadd.f32 0.0, %v1036
        %1038 = vdwg.mxu0
        %v1039 = vld [vmem:[%s4] sm:$0xf]
        %v1040 = vld [vmem:[%s4 + $0x4] sm:$0xf]
        %v1041 = vld [vmem:[%s4 + $0x8] sm:$0xf]
        %v1042 = vld [vmem:[%s4 + $0xc] sm:$0xf]
        %v1043 = vld [vmem:[%s4 + $0x10] sm:$0xf]
        %v1044 = vld [vmem:[%s4 + $0x14] sm:$0xf]
        %v1045 = vld [vmem:[%s4 + $0x18] sm:$0xf]
        %v1046 = vld [vmem:[%s4 + $0x1c] sm:$0xf]
        %v1047 = vld [vmem:[%s348] sm:$0xf]
        %v1048 = vld [vmem:[%s348 + $0x4] sm:$0xf]
        %v1049 = vld [vmem:[%s5] sm:$0xf]
        %v1050 = vld [vmem:[%s5 + $0x4] sm:$0xf]
        %v1051 = vld [vmem:[%s5 + $0x8] sm:$0xf]
        %v1052 = vld [vmem:[%s5 + $0xc] sm:$0xf]
        %v1053 = vld [vmem:[%s5 + $0x10] sm:$0xf]
        %v1054 = vld [vmem:[%s5 + $0x14] sm:$0xf]
        %v1055 = vld [vmem:[%s5 + $0x18] sm:$0xf]
        %v1056 = vld [vmem:[%s5 + $0x1c] sm:$0xf]
        %v1057 = vunpack.c.l.bf16 %v1049
        %v1058 = vunpack.c.l.bf16 %v1050
        %v1059 = vunpack.c.l.bf16 %v1051
        %v1060 = vunpack.c.l.bf16 %v1052
        %v1061 = vunpack.c.l.bf16 %v1053
        %v1062 = vunpack.c.l.bf16 %v1054
        %v1063 = vunpack.c.l.bf16 %v1055
        %v1064 = vunpack.c.l.bf16 %v1056
        %vm1065 = vcmask 261120
        %v1067 = vsel %vm1065, %v1057, 0
        %v1070 = vsel %vm1065, %v1058, 0
        %v1073 = vsel %vm1065, %v1059, 0
        %v1076 = vsel %vm1065, %v1060, 0
        %v1079 = vsel %vm1065, %v1061, 0
        %v1082 = vsel %vm1065, %v1062, 0
        %v1085 = vsel %vm1065, %v1063, 0
        %v1088 = vsel %vm1065, %v1064, 0
        %1090 = vmatpush.msra.mxu0 0.0
        %1091 = vmatpush.msra.mxu0 0.0
        %1092 = vmatpush.msra.mxu0 0.0
        %1093 = vmatpush.msra.mxu0 0.0
        %1094 = vmatpush.msra.mxu0 0.0
        %1095 = vmatpush.msra.mxu0 0.0
        %1096 = vmatpush.msra.mxu0 0.0
        %1097 = vmatpush.msra.mxu0 0.0
        %1098 = vmatpush.msra.mxu0 0.0
        %1099 = vmatpush.msra.mxu0 0.0
        %1100 = vmatpush.msra.mxu0 0.0
        %1101 = vmatpush.msra.mxu0 0.0
        %1102 = vmatpush.msra.mxu0 %v1037
        %1103 = vmatpush.msra.mxu0 %v1034
        %1104 = vmatpush.msra.mxu0 %v1031
        %1105 = vmatpush.msra.mxu0 %v1028
        %1106 = vmatmul.f32.gmra.mxu0 %v1067
        %v1107 = vpop.f32.mrf.mxu0
        %v1108 = vadd.f32 0.0, %v1107
        %1109 = vmatmul.f32.gmra.mxu0 %v1070
        %v1110 = vpop.f32.mrf.mxu0
        %v1111 = vadd.f32 0.0, %v1110
        %1112 = vmatmul.f32.gmra.mxu0 %v1073
        %v1113 = vpop.f32.mrf.mxu0
        %v1114 = vadd.f32 0.0, %v1113
        %1115 = vmatmul.f32.gmra.mxu0 %v1076
        %v1116 = vpop.f32.mrf.mxu0
        %v1117 = vadd.f32 0.0, %v1116
        %1118 = vmatmul.f32.gmra.mxu0 %v1079
        %v1119 = vpop.f32.mrf.mxu0
        %v1120 = vadd.f32 0.0, %v1119
        %1121 = vmatmul.f32.gmra.mxu0 %v1082
        %v1122 = vpop.f32.mrf.mxu0
        %v1123 = vadd.f32 0.0, %v1122
        %1124 = vmatmul.f32.gmra.mxu0 %v1085
        %v1125 = vpop.f32.mrf.mxu0
        %v1126 = vadd.f32 0.0, %v1125
        %1127 = vmatmul.f32.gmra.mxu0 %v1088
        %v1128 = vpop.f32.mrf.mxu0
        %v1129 = vadd.f32 0.0, %v1128
        %1130 = vdwg.mxu0
        %v1139 = vunpack.c.l.b16 %v1039
        %v1140 = vunpack.c.l.b16 %v1040
        %v1141 = vunpack.c.l.b16 %v1041
        %v1142 = vunpack.c.l.b16 %v1042
        %v1143 = vunpack.c.l.b16 %v1043
        %v1144 = vunpack.c.l.b16 %v1044
        %v1145 = vunpack.c.l.b16 %v1045
        %v1146 = vunpack.c.l.b16 %v1046
        %v1147 = vpack.c.b16 %v1140, %v1139
        %v1148 = vpack.c.b16 %v1142, %v1141
        %v1149 = vpack.c.b16 %v1144, %v1143
        %v1150 = vpack.c.b16 %v1146, %v1145
        %v1153 = vunpack.c.l.b16 %v1047
        %v1154 = vunpack.c.l.b16 %v1048
        %v1155 = vpack.c.b16 %v1154, %v1153
        %vm1157 = vcmask 130048
        %v1159 = vsel %vm1157, %v1147, 0
        %v1162 = vsel %vm1157, %v1148, 0
        %v1165 = vsel %vm1157, %v1149, 0
        %v1168 = vsel %vm1157, %v1150, 0
        %1170 = vmatpush.bf16.msra.mxu0 0
        %1171 = vmatpush.bf16.msra.mxu0 0
        %1172 = vmatpush.bf16.msra.mxu0 0
        %1173 = vmatpush.bf16.msra.mxu0 0
        %1174 = vmatpush.bf16.msra.mxu0 0
        %1175 = vmatpush.bf16.msra.mxu0 0
        %1176 = vmatpush.bf16.msra.mxu0 0
        %1177 = vmatpush.bf16.msra.mxu0 %v1155
        %1178 = vmatmul.bf16.gmra.mxu0 %v1159
        %v1179 = vpop.f32.mrf.mxu0
        %v1180 = vadd.f32 %v1108, %v1179
        %v1181 = vpop.f32.mrf.mxu0
        %v1182 = vadd.f32 %v1111, %v1181
        %1183 = vmatmul.bf16.gmra.mxu0 %v1162
        %v1184 = vpop.f32.mrf.mxu0
        %v1185 = vadd.f32 %v1114, %v1184
        %v1186 = vpop.f32.mrf.mxu0
        %v1187 = vadd.f32 %v1117, %v1186
        %1188 = vmatmul.bf16.gmra.mxu0 %v1165
        %v1189 = vpop.f32.mrf.mxu0
        %v1190 = vadd.f32 %v1120, %v1189
        %v1191 = vpop.f32.mrf.mxu0
        %v1192 = vadd.f32 %v1123, %v1191
        %1193 = vmatmul.bf16.gmra.mxu0 %v1168
        %v1194 = vpop.f32.mrf.mxu0
        %v1195 = vadd.f32 %v1126, %v1194
        %v1196 = vpop.f32.mrf.mxu0
        %v1197 = vadd.f32 %v1129, %v1196
        %1198 = vdwg.mxu0
        %v1199 = vld [vmem:[%s6] sm:$0xff]
        %v1200 = vld [vmem:[%s6 + $0x8] sm:$0xff]
        %v1201 = vld [vmem:[%s6 + $0x10] sm:$0xff]
        %v1202 = vld [vmem:[%s6 + $0x18] sm:$0xff]
        %v1203 = vld [vmem:[%s6 + $0x20] sm:$0xff]
        %v1204 = vld [vmem:[%s6 + $0x28] sm:$0xff]
        %v1205 = vld [vmem:[%s6 + $0x30] sm:$0xff]
        %v1206 = vld [vmem:[%s6 + $0x38] sm:$0xff]
        %1208 = vset.pattern.permute.xlu0 0
        %1209 = vperm.xlu0 %1208, %v1199
        %v1210 = vpop.permute.xlu0 %1209
        %1213 = vset.pattern.permute.xlu0 0
        %1214 = vperm.xlu0 %1213, %v1200
        %v1215 = vpop.permute.xlu0 %1214
        %1218 = vset.pattern.permute.xlu0 0
        %1219 = vperm.xlu0 %1218, %v1201
        %v1220 = vpop.permute.xlu0 %1219
        %1223 = vset.pattern.permute.xlu0 0
        %1224 = vperm.xlu0 %1223, %v1202
        %v1225 = vpop.permute.xlu0 %1224
        %1228 = vset.pattern.permute.xlu0 0
        %1229 = vperm.xlu0 %1228, %v1203
        %v1230 = vpop.permute.xlu0 %1229
        %1233 = vset.pattern.permute.xlu0 0
        %1234 = vperm.xlu0 %1233, %v1204
        %v1235 = vpop.permute.xlu0 %1234
        %1238 = vset.pattern.permute.xlu0 0
        %1239 = vperm.xlu0 %1238, %v1205
        %v1240 = vpop.permute.xlu0 %1239
        %1243 = vset.pattern.permute.xlu0 0
        %1244 = vperm.xlu0 %1243, %v1206
        %v1245 = vpop.permute.xlu0 %1244
        %v1247 = vadd.f32 %v1180, %v1210
        %v1248 = vadd.f32 %v1182, %v1215
        %v1249 = vadd.f32 %v1185, %v1220
        %v1250 = vadd.f32 %v1187, %v1225
        %v1251 = vadd.f32 %v1190, %v1230
        %v1252 = vadd.f32 %v1192, %v1235
        %v1253 = vadd.f32 %v1195, %v1240
        %v1254 = vadd.f32 %v1197, %v1245
        %1255 = vst [vmem:[%s394] sm:$0xff] %v1247
        %1256 = vst [vmem:[%s394 + $0x8] sm:$0xff] %v1248
        %1257 = vst [vmem:[%s394 + $0x10] sm:$0xff] %v1249
        %1258 = vst [vmem:[%s394 + $0x18] sm:$0xff] %v1250
        %1259 = vst [vmem:[%s394 + $0x20] sm:$0xff] %v1251
        %1260 = vst [vmem:[%s394 + $0x28] sm:$0xff] %v1252
        %1261 = vst [vmem:[%s394 + $0x30] sm:$0xff] %v1253
        %1262 = vst [vmem:[%s394 + $0x38] sm:$0xff] %v1254
        %s1263 = sand.u32 %s214, 1
        %s1264 = scalar_lea.sflag [#allocation4], %s1263
        %s1265 = sand.u32 %s214, 1
        %s1266 = smul.addr %s1265, 64
        %s1267 = scalar_lea.vmem [#allocation3], %s1266
        // Predicated region
        $region90: #{pointnet_fp_pointconv.1} parent=84 // pred_check
          %p1268 = pneg %p224
        $region91: #{pointnet_fp_pointconv.1} parent=84 // pred_check_branch
          %1270 = sbr.rel (%p1268) target = $region93
        $region92: #{pointnet_fp_pointconv.1} parent=84 // pred_region
          %1272 = vsyncadd %s1264, 0
          %s1273 = smul.addr %s25, 16
          %s1274 = sadd.s32 %s26, %s1273
          %s1275 = smul.addr %s1274, 8
          %s1276 = scalar_lea.hbm %s7, %s1275
          %s1277 = sshll.u32 %s1267, 4
          %s1278 = int_to_ptr.vmem [resolvable:$true] %s1277
          %s1279 = sshll.u32 %s1276, 4
          %s1280 = int_to_ptr.hbm [resolvable:$true] %s1279
          %1285 = dma.vmem_to_hbm [thread:$0]  %s1278, 1024, %s1280, %s1264, 128, 256, 8
        $region93: #{pointnet_fp_pointconv.1} parent=84 // pred_fallthru
          _
      $region85: #{pointnet_fp_pointconv.1} parent=5 // pred_fallthru
        _
      %p1286 = scmp.le.s32.totalorder 2, %s16
      // Predicated region
      $region94: #{pointnet_fp_pointconv.1} parent=5 // pred_check
        %p1287 = pneg %p1286
      $region95: #{pointnet_fp_pointconv.1} parent=5 // pred_check_branch
        %1289 = sbr.rel (%p1287) target = $region97
      $region96: #{pointnet_fp_pointconv.1} parent=5 // pred_region
        %s1290 = ssub.s32 %s16, 2
        // Predicated region
        $region98: #{pointnet_fp_pointconv.1} parent=96 // pred_check
          %p1291 = pneg %p230
        $region99: #{pointnet_fp_pointconv.1} parent=96 // pred_check_branch
          %1293 = sbr.rel (%p1291) target = $region101
        $region100: #{pointnet_fp_pointconv.1} parent=96 // pred_region
          %s1294 = sand.u32 %s215, 1
          %s1295 = scalar_lea.sflag [#allocation4], %s1294
          %s1296 = sand.u32 %s215, 1
          %s1297 = smul.addr %s1296, 64
          %s1298 = scalar_lea.vmem [#allocation3], %s1297
          %1300 = dma.done %s1295, 1024
        $region101: #{pointnet_fp_pointconv.1} parent=96 // pred_fallthru
          _
      $region97: #{pointnet_fp_pointconv.1} parent=5 // pred_fallthru
        _
    $region6: #{pointnet_fp_pointconv.1} parent=1 // loop_footer
      %s20 = sadd.s32 1, %s16
    $region7: #{pointnet_fp_pointconv.1} parent=1 // loop_footer_branch
      %15 = sbr.rel target = $region3
    $region8: #{pointnet_fp_pointconv.1} parent=1 // loop_exit
      _
    %1301 = vsyncpa [#allocation4], 1
    %s1302 = scalar_lea.sflag [#allocation4], 1
    %1303 = vsyncpa %s1302, 1

</llo_original>
